<compile_context>
chip_gen: v5e
topology: v5e:2x2
jax: 0.10.0
libtpu: 0.0.40
codegen_flags: <defaults>
</compile_context>

<pallas_src>
import jax
import jax.numpy as jnp
import numpy as np
from jax.experimental import pallas as pl
from jax.experimental.pallas import tpu as pltpu

_INV_SQRT2 = 0.7071067811865476
_INV_RES = 1.0 / 1.414            # residual "/1.414" strength-reduced to a multiply
_ERF_A = (0.254829592, -0.284496736, 1.421413741, -1.453152027, 1.061405429)
_ERF_P = 0.3275911


def _round_up(a, b):
    return (a + b - 1) // b * b


def _gelu(x):
    # PyTorch nn.GELU() default = exact (erf) GELU.  Abramowitz & Stegun 7.1.26
    # rational approximation (|err| <= 1.5e-7); exp and the reciprocal run on the EUP.
    # TODO(synk): exact lax.erf has no guaranteed Mosaic lowering; this matches it to fp32 precision.
    a1, a2, a3, a4, a5 = _ERF_A
    z = x * _INV_SQRT2
    s = jnp.where(z >= 0.0, 1.0, -1.0)
    az = jnp.abs(z)
    tt = pl.reciprocal(1.0 + _ERF_P * az, approx=True)
    poly = ((((a5 * tt + a4) * tt + a3) * tt + a2) * tt + a1) * tt
    erf = s * (1.0 - poly * jnp.exp(-az * az))
    return 0.5 * x * (1.0 + erf)


def _build_kernel(w_meta, v_meta):
    """Kernel closure over static (row_start, n_rows, n_cols) unpack metadata."""

    def kernel(x_ref, c_ref, t_ref, m_ref, w_ref, v_ref, out_ref):
        def W(name):                            # static slice of the packed weight slab
            r0, nr, nc = w_meta[name]
            return w_ref[r0:r0 + nr, :nc]

        def V(name):                            # static slice of the packed row-vector slab
            r0, _, nc = v_meta[name]
            return v_ref[r0:r0 + 1, :nc]

        def dot(a, b):
            return jnp.dot(a, b, preferred_element_type=jnp.float32)

        # --- init_fc: Linear -> GELU -> Linear   (dropout1 == identity in eval) ---
        x = x_ref[...]
        h = _gelu(dot(x, W("iw0")) + V("ib0"))
        x_emb = dot(h, W("iw1")) + V("ib1")                          # (tb, nf)

        # --- up block: ResidualMLPBlock(nf -> 2nf, is_res=True); BN folded into W/b ---
        u1 = _gelu(dot(x_emb, W("uw1")) + V("ub1"))
        u2 = _gelu(dot(u1, W("uw2")) + V("ub2"))
        up = (u1 + u2) * _INV_RES                                    # (tb, 2nf)

        # --- context embedding: c * (1 - mask) -> Linear -> GELU -> Linear ---
        c_masked = c_ref[...] * (1.0 - m_ref[...])
        ch = _gelu(dot(c_masked, W("cw0")) + V("cb0"))
        cemb = dot(ch, W("cw1")) + V("cb1")                          # (tb, 2nf)

        # --- time embedding: (tb,1) @ (1,2nf) expressed as a lane broadcast ---
        th = _gelu(t_ref[...] * V("tw0") + V("tb0"))
        temb = dot(th, W("tw1")) + V("tb1")                          # (tb, 2nf)

        # --- down block: ResidualMLPBlock(2nf -> nf) on cemb*up + temb; BN folded ---
        dinp = cemb * up + temb
        d1 = _gelu(dot(dinp, W("dw1")) + V("db1"))
        d2 = _gelu(dot(d1, W("dw2")) + V("db2"))
        down = (d1 + d2) * _INV_RES                                  # (tb, nf)
        # dropout2 == identity in eval

        # --- out block: cat((down, x_emb), 1) folded into a split matmul; BN folded ---
        o1 = _gelu(dot(down, W("ow1a")) + dot(x_emb, W("ow1b")) + V("ob1"))
        # Final Linear is zero-padded to a lane-dense 128-wide output slab.
        out_ref[...] = dot(o1, W("ow2")) + V("ob2")                  # (tb, out_pad)

    return kernel


def _pack_rows(entries, lane_w):
    """Stack 2-D f32 arrays into one (R, lane_w) slab, each entry 8-sublane aligned."""
    blocks, meta, row = [], {}, 0
    for name, a in entries:
        a = jnp.asarray(a, jnp.float32)
        r, c = a.shape
        r_pad = _round_up(r, 8)
        buf = jnp.zeros((r_pad, lane_w), jnp.float32).at[:r, :c].set(a)
        blocks.append(buf)
        meta[name] = (row, r, c)
        row += r_pad
    return jnp.concatenate(blocks, axis=0), meta


def pack_contextnet_params(P, in_fs, n_context_fs, n_infeat):
    """Fold eval-mode BatchNorm into the preceding Linear and pack everything into two
    VMEM-friendly slabs (weights + bias/row vectors)."""
    nf, nf2 = n_infeat, 2 * n_infeat
    out_pad = _round_up(in_fs, 128)
    lane_w = _round_up(max(nf, nf2, in_fs, n_context_fs, out_pad), 128)

    def fold(w, b, s, h):   # (x@w + b)*s + h  ==  x@(w*s) + (b*s + h)
        return w * s, b * s + h

    uw1, ub1 = fold(P["uw1"], P["ub1"], P["us1"], P["uh1"])
    uw2, ub2 = fold(P["uw2"], P["ub2"], P["us2"], P["uh2"])
    dw1, db1 = fold(P["dw1"], P["db1"], P["ds1"], P["dh1"])
    dw2, db2 = fold(P["dw2"], P["db2"], P["ds2"], P["dh2"])
    ow1a = P["ow1a"] * P["os1"]
    ow1b = P["ow1b"] * P["os1"]
    ob1 = P["ob1"] * P["os1"] + P["oh1"]

    # zero-pad the final Linear to a lane-dense (multiple-of-128) output width
    ow2 = jnp.zeros((in_fs, out_pad), jnp.float32).at[:, :in_fs].set(P["ow2"])
    ob2 = jnp.zeros((1, out_pad), jnp.float32).at[:, :in_fs].set(P["ob2"])

    w_pack, w_meta = _pack_rows(
        [("iw0", P["iw0"]), ("iw1", P["iw1"]), ("tw1", P["tw1"]),
         ("cw0", P["cw0"]), ("cw1", P["cw1"]),
         ("uw1", uw1), ("uw2", uw2), ("dw1", dw1), ("dw2", dw2),
         ("ow1a", ow1a), ("ow1b", ow1b), ("ow2", ow2)], lane_w)
    v_pack, v_meta = _pack_rows(
        [("ib0", P["ib0"]), ("ib1", P["ib1"]),
         ("tw0", P["tw0"]), ("tb0", P["tb0"]), ("tb1", P["tb1"]),
         ("cb0", P["cb0"]), ("cb1", P["cb1"]),
         ("ub1", ub1), ("ub2", ub2), ("db1", db1), ("db2", db2),
         ("ob1", ob1), ("ob2", ob2)], lane_w)

    return {"w_pack": w_pack, "w_meta": w_meta,
            "v_pack": v_pack, "v_meta": v_meta, "out_pad": out_pad}


def contextnet_forward(x, c, t, context_mask, packed, batch_tile=512):
    """Shape glue + one batch-gridded pallas_call (weights stay VMEM-resident)."""
    if t.ndim == 1:
        t = t[:, None]
    if context_mask.ndim == 1:
        context_mask = context_mask[:, None]
    x = x.astype(jnp.float32)
    c = c.astype(jnp.float32)
    t = t.astype(jnp.float32)
    m = context_mask.astype(jnp.float32)

    bs, in_fs = x.shape
    ctx = c.shape[1]
    out_pad = packed["out_pad"]
    w_pack, v_pack = packed["w_pack"], packed["v_pack"]

    # Batch tile: multiple of 8 sublanes, capped at 512 rows so per-tile activations stay
    # far under the v7x 32 MiB scoped-VMEM default while still amortizing the matmul chain.
    bs_pad = _round_up(bs, 8)
    tb = min(bs_pad, batch_tile)
    bs_pad = _round_up(bs_pad, tb)
    if bs_pad != bs:
        pad = bs_pad - bs
        x = jnp.pad(x, ((0, pad), (0, 0)))
        c = jnp.pad(c, ((0, pad), (0, 0)))
        t = jnp.pad(t, ((0, pad), (0, 0)))
        m = jnp.pad(m, ((0, pad), (0, 0)))

    kernel = _build_kernel(packed["w_meta"], packed["v_meta"])
    row = lambda width: pl.BlockSpec((tb, width), lambda i: (i, 0))
    resident = lambda a: pl.BlockSpec(a.shape, lambda i: (0, 0))

    out = pl.pallas_call(
        kernel,
        out_shape=jax.ShapeDtypeStruct((bs_pad, out_pad), jnp.float32),
        grid=(bs_pad // tb,),
        in_specs=[row(in_fs), row(ctx), row(1), row(1),
                  resident(w_pack), resident(v_pack)],
        out_specs=row(out_pad),
        compiler_params=pltpu.CompilerParams(
            dimension_semantics=("parallel",)),
    )(x, c, t, m, w_pack, v_pack)
    return out[:bs, :in_fs]


def init_contextnet_params(key, in_fs, n_context_fs, n_infeat):
    """Deterministic init mirroring ContextNet.weights_init (Linear ~N(0,0.02),
    BN gamma ~N(1,0.02), beta=0); BN running stats fresh (mean=0, var=1)."""
    nf, nf2 = n_infeat, 2 * n_infeat
    eps = 1e-5
    keys = iter(jax.random.split(key, 64))

    def linear(din, dout):
        w = 0.02 * jax.random.normal(next(keys), (din, dout), jnp.float32)
        b = 0.02 * jax.random.normal(next(keys), (1, dout), jnp.float32)
        return w, b

    def bn(dim):
        gamma = 1.0 + 0.02 * jax.random.normal(next(keys), (1, dim), jnp.float32)
        beta = jnp.zeros((1, dim), jnp.float32)
        mean = jnp.zeros((1, dim), jnp.float32)
        var = jnp.ones((1, dim), jnp.float32)
        scale = gamma / jnp.sqrt(var + eps)
        shift = beta - mean * scale
        return scale, shift

    P = {}
    P["iw0"], P["ib0"] = linear(in_fs, nf)          # init_fc
    P["iw1"], P["ib1"] = linear(nf, nf)
    P["tw0"], P["tb0"] = linear(1, nf2)             # timeembed
    P["tw1"], P["tb1"] = linear(nf2, nf2)
    P["cw0"], P["cb0"] = linear(n_context_fs, nf2)  # contextembed
    P["cw1"], P["cb1"] = linear(nf2, nf2)
    P["uw1"], P["ub1"] = linear(nf, nf2)            # up block
    P["us1"], P["uh1"] = bn(nf2)
    P["uw2"], P["ub2"] = linear(nf2, nf2)
    P["us2"], P["uh2"] = bn(nf2)
    P["dw1"], P["db1"] = linear(nf2, nf)            # down block
    P["ds1"], P["dh1"] = bn(nf)
    P["dw2"], P["db2"] = linear(nf, nf)
    P["ds2"], P["dh2"] = bn(nf)
    ow1, P["ob1"] = linear(nf2, in_fs)              # out block
    P["ow1a"], P["ow1b"] = ow1[:nf], ow1[nf:]
    P["os1"], P["oh1"] = bn(in_fs)
    P["ow2"], P["ob2"] = linear(in_fs, in_fs)
    return P


def reference_forward(x, c, t, context_mask, P):
    """Pure-JAX reference (exact erf GELU) mirroring the PyTorch math in eval mode."""
    gelu = lambda v: jax.nn.gelu(v, approximate=False)
    if t.ndim == 1:
        t = t[:, None]
    if context_mask.ndim == 1:
        context_mask = context_mask[:, None]
    x_emb = gelu(x @ P["iw0"] + P["ib0"]) @ P["iw1"] + P["ib1"]
    u1 = gelu((x_emb @ P["uw1"] + P["ub1"]) * P["us1"] + P["uh1"])
    u2 = gelu((u1 @ P["uw2"] + P["ub2"]) * P["us2"] + P["uh2"])
    up = (u1 + u2) / 1.414
    c_masked = c * (1.0 - context_mask)
    cemb = gelu(c_masked @ P["cw0"] + P["cb0"]) @ P["cw1"] + P["cb1"]
    temb = gelu(t @ P["tw0"] + P["tb0"]) @ P["tw1"] + P["tb1"]
    dinp = cemb * up + temb
    d1 = gelu((dinp @ P["dw1"] + P["db1"]) * P["ds1"] + P["dh1"])
    d2 = gelu((d1 @ P["dw2"] + P["db2"]) * P["ds2"] + P["dh2"])
    down = (d1 + d2) / 1.414
    o_pre = down @ P["ow1a"] + x_emb @ P["ow1b"] + P["ob1"]
    o1 = gelu(o_pre * P["os1"] + P["oh1"])
    return o1 @ P["ow2"] + P["ob2"]


if __name__ == "__main__":
    bs, in_fs, n_context_fs, n_infeat = 8, 4, 8, 32
    key = jax.random.PRNGKey(0)
    kx, kc, kt, km, kp = jax.random.split(key, 5)

    x = jax.random.normal(kx, (bs, in_fs), jnp.float32)
    c = jax.random.normal(kc, (bs, n_context_fs), jnp.float32)
    t = jax.random.uniform(kt, (bs, 1), jnp.float32)
    context_mask = (jax.random.uniform(km, (bs,)) > 0.5).astype(jnp.float32)

    P = init_contextnet_params(kp, in_fs, n_context_fs, n_infeat)
    packed = pack_contextnet_params(P, in_fs, n_context_fs, n_infeat)

    out = contextnet_forward(x, c, t, context_mask, packed)
    out = jax.block_until_ready(out)

    ref = reference_forward(x, c, t, context_mask, P)
    np.testing.assert_allclose(np.asarray(out), np.asarray(ref), rtol=1e-3, atol=1e-3)
    assert out.shape == (bs, in_fs)

    print("KERNEL_OK")
</pallas_src>

<mosaic_0001>
module attributes {stable_mosaic.version = 11 : i64} {
  func.func @kernel(%arg0: i32, %arg1: memref<8x4xf32, #tpu.memory_space<vmem>>, %arg2: memref<8x8xf32, #tpu.memory_space<vmem>>, %arg3: memref<8x1xf32, #tpu.memory_space<vmem>>, %arg4: memref<8x1xf32, #tpu.memory_space<vmem>>, %arg5: memref<440x128xf32, #tpu.memory_space<vmem>>, %arg6: memref<104x128xf32, #tpu.memory_space<vmem>>, %arg7: memref<8x128xf32, #tpu.memory_space<vmem>>) attributes {dimension_semantics = [#tpu.dimension_semantics<parallel>], iteration_bounds = array<i64: 1>, scalar_prefetch = 0 : i64, scratch_operands = 0 : i64, tpu.core_type = #tpu.core_type<tc>, window_params = [{transform_indices = @transform_0, window_bounds = array<i64: 8, 4>}, {transform_indices = @transform_1, window_bounds = array<i64: 8, 8>}, {transform_indices = @transform_2, window_bounds = array<i64: 8, 1>}, {transform_indices = @transform_3, window_bounds = array<i64: 8, 1>}, {pipeline_mode = #tpu.pipeline_mode<synchronous>, transform_indices = @transform_4, window_bounds = array<i64: 440, 128>}, {pipeline_mode = #tpu.pipeline_mode<synchronous>, transform_indices = @transform_5, window_bounds = array<i64: 104, 128>}, {transform_indices = @transform_6, window_bounds = array<i64: 8, 128>}]} {
    %c0 = arith.constant 0 : index
    %c0_0 = arith.constant 0 : index
    %0 = vector.load %arg1[%c0, %c0_0] : memref<8x4xf32, #tpu.memory_space<vmem>>, vector<8x4xf32>
    %c0_1 = arith.constant 0 : index
    %c0_2 = arith.constant 0 : index
    %1 = vector.load %arg5[%c0_1, %c0_2] : memref<440x128xf32, #tpu.memory_space<vmem>>, vector<4x32xf32>
    %cst = arith.constant dense<0.000000e+00> : vector<8x32xf32>
    %2 = tpu.matmul %0, %1, %cst {dimension_numbers = #tpu.dot_dimension_numbers<[1], [0], [0], [1], [0, 0, 1, 1], [], []>} : vector<8x4xf32>, vector<4x32xf32>, vector<8x32xf32> -> vector<8x32xf32>
    %c0_3 = arith.constant 0 : index
    %c0_4 = arith.constant 0 : index
    %3 = vector.load %arg6[%c0_3, %c0_4] : memref<104x128xf32, #tpu.memory_space<vmem>>, vector<1x32xf32>
    %4 = vector.broadcast %3 : vector<1x32xf32> to vector<8x32xf32>
    %5 = arith.addf %2, %4 : vector<8x32xf32>
    %cst_5 = arith.constant 0.707106769 : f32
    %6 = vector.broadcast %cst_5 : f32 to vector<8x32xf32>
    %7 = arith.mulf %5, %6 : vector<8x32xf32>
    %cst_6 = arith.constant 0.000000e+00 : f32
    %8 = vector.broadcast %cst_6 : f32 to vector<8x32xf32>
    %9 = arith.cmpf oge, %7, %8 : vector<8x32xf32>
    %cst_7 = arith.constant 1.000000e+00 : f32
    %cst_8 = arith.constant -1.000000e+00 : f32
    %10 = vector.broadcast %cst_7 : f32 to vector<8x32xf32>
    %11 = vector.broadcast %cst_8 : f32 to vector<8x32xf32>
    %12 = arith.select %9, %10, %11 : vector<8x32xi1>, vector<8x32xf32>
    %13 = math.absf %7 : vector<8x32xf32>
    %cst_9 = arith.constant 0.327591091 : f32
    %14 = vector.broadcast %cst_9 : f32 to vector<8x32xf32>
    %15 = arith.mulf %14, %13 : vector<8x32xf32>
    %cst_10 = arith.constant 1.000000e+00 : f32
    %16 = vector.broadcast %cst_10 : f32 to vector<8x32xf32>
    %17 = arith.addf %16, %15 : vector<8x32xf32>
    %18 = tpu.reciprocal %17 {approx = true} : vector<8x32xf32> -> vector<8x32xf32>
    %cst_11 = arith.constant 1.06140542 : f32
    %19 = vector.broadcast %cst_11 : f32 to vector<8x32xf32>
    %20 = arith.mulf %19, %18 : vector<8x32xf32>
    %cst_12 = arith.constant -1.45315206 : f32
    %21 = vector.broadcast %cst_12 : f32 to vector<8x32xf32>
    %22 = arith.addf %20, %21 : vector<8x32xf32>
    %23 = arith.mulf %22, %18 : vector<8x32xf32>
    %cst_13 = arith.constant 1.42141378 : f32
    %24 = vector.broadcast %cst_13 : f32 to vector<8x32xf32>
    %25 = arith.addf %23, %24 : vector<8x32xf32>
    %26 = arith.mulf %25, %18 : vector<8x32xf32>
    %cst_14 = arith.constant -0.284496725 : f32
    %27 = vector.broadcast %cst_14 : f32 to vector<8x32xf32>
    %28 = arith.addf %26, %27 : vector<8x32xf32>
    %29 = arith.mulf %28, %18 : vector<8x32xf32>
    %cst_15 = arith.constant 0.254829586 : f32
    %30 = vector.broadcast %cst_15 : f32 to vector<8x32xf32>
    %31 = arith.addf %29, %30 : vector<8x32xf32>
    %32 = arith.mulf %31, %18 : vector<8x32xf32>
    %cst_16 = arith.constant 0.000000e+00 : f32
    %33 = vector.broadcast %cst_16 : f32 to vector<8x32xf32>
    %34 = arith.subf %33, %13 : vector<8x32xf32>
    %35 = arith.mulf %34, %13 : vector<8x32xf32>
    %36 = math.exp %35 : vector<8x32xf32>
    %37 = arith.mulf %32, %36 : vector<8x32xf32>
    %cst_17 = arith.constant 1.000000e+00 : f32
    %38 = vector.broadcast %cst_17 : f32 to vector<8x32xf32>
    %39 = arith.subf %38, %37 : vector<8x32xf32>
    %40 = arith.mulf %12, %39 : vector<8x32xf32>
    %cst_18 = arith.constant 5.000000e-01 : f32
    %41 = vector.broadcast %cst_18 : f32 to vector<8x32xf32>
    %42 = arith.mulf %41, %5 : vector<8x32xf32>
    %cst_19 = arith.constant 1.000000e+00 : f32
    %43 = vector.broadcast %cst_19 : f32 to vector<8x32xf32>
    %44 = arith.addf %43, %40 : vector<8x32xf32>
    %45 = arith.mulf %42, %44 : vector<8x32xf32>
    %c8 = arith.constant 8 : index
    %c0_20 = arith.constant 0 : index
    %46 = vector.load %arg5[%c8, %c0_20] : memref<440x128xf32, #tpu.memory_space<vmem>>, vector<32x32xf32>
    %cst_21 = arith.constant dense<0.000000e+00> : vector<8x32xf32>
    %47 = tpu.matmul %45, %46, %cst_21 {dimension_numbers = #tpu.dot_dimension_numbers<[1], [0], [0], [1], [0, 0, 1, 1], [], []>} : vector<8x32xf32>, vector<32x32xf32>, vector<8x32xf32> -> vector<8x32xf32>
    %c8_22 = arith.constant 8 : index
    %c0_23 = arith.constant 0 : index
    %48 = vector.load %arg6[%c8_22, %c0_23] : memref<104x128xf32, #tpu.memory_space<vmem>>, vector<1x32xf32>
    %49 = vector.broadcast %48 : vector<1x32xf32> to vector<8x32xf32>
    %50 = arith.addf %47, %49 : vector<8x32xf32>
    %c176 = arith.constant 176 : index
    %c0_24 = arith.constant 0 : index
    %51 = vector.load %arg5[%c176, %c0_24] : memref<440x128xf32, #tpu.memory_space<vmem>>, vector<32x64xf32>
    %cst_25 = arith.constant dense<0.000000e+00> : vector<8x64xf32>
    %52 = tpu.matmul %50, %51, %cst_25 {dimension_numbers = #tpu.dot_dimension_numbers<[1], [0], [0], [1], [0, 0, 1, 1], [], []>} : vector<8x32xf32>, vector<32x64xf32>, vector<8x64xf32> -> vector<8x64xf32>
    %c56 = arith.constant 56 : index
    %c0_26 = arith.constant 0 : index
    %53 = vector.load %arg6[%c56, %c0_26] : memref<104x128xf32, #tpu.memory_space<vmem>>, vector<1x64xf32>
    %54 = vector.broadcast %53 : vector<1x64xf32> to vector<8x64xf32>
    %55 = arith.addf %52, %54 : vector<8x64xf32>
    %cst_27 = arith.constant 0.707106769 : f32
    %56 = vector.broadcast %cst_27 : f32 to vector<8x64xf32>
    %57 = arith.mulf %55, %56 : vector<8x64xf32>
    %cst_28 = arith.constant 0.000000e+00 : f32
    %58 = vector.broadcast %cst_28 : f32 to vector<8x64xf32>
    %59 = arith.cmpf oge, %57, %58 : vector<8x64xf32>
    %cst_29 = arith.constant 1.000000e+00 : f32
    %cst_30 = arith.constant -1.000000e+00 : f32
    %60 = vector.broadcast %cst_29 : f32 to vector<8x64xf32>
    %61 = vector.broadcast %cst_30 : f32 to vector<8x64xf32>
    %62 = arith.select %59, %60, %61 : vector<8x64xi1>, vector<8x64xf32>
    %63 = math.absf %57 : vector<8x64xf32>
    %cst_31 = arith.constant 0.327591091 : f32
    %64 = vector.broadcast %cst_31 : f32 to vector<8x64xf32>
    %65 = arith.mulf %64, %63 : vector<8x64xf32>
    %cst_32 = arith.constant 1.000000e+00 : f32
    %66 = vector.broadcast %cst_32 : f32 to vector<8x64xf32>
    %67 = arith.addf %66, %65 : vector<8x64xf32>
    %68 = tpu.reciprocal %67 {approx = true} : vector<8x64xf32> -> vector<8x64xf32>
    %cst_33 = arith.constant 1.06140542 : f32
    %69 = vector.broadcast %cst_33 : f32 to vector<8x64xf32>
    %70 = arith.mulf %69, %68 : vector<8x64xf32>
    %cst_34 = arith.constant -1.45315206 : f32
    %71 = vector.broadcast %cst_34 : f32 to vector<8x64xf32>
    %72 = arith.addf %70, %71 : vector<8x64xf32>
    %73 = arith.mulf %72, %68 : vector<8x64xf32>
    %cst_35 = arith.constant 1.42141378 : f32
    %74 = vector.broadcast %cst_35 : f32 to vector<8x64xf32>
    %75 = arith.addf %73, %74 : vector<8x64xf32>
    %76 = arith.mulf %75, %68 : vector<8x64xf32>
    %cst_36 = arith.constant -0.284496725 : f32
    %77 = vector.broadcast %cst_36 : f32 to vector<8x64xf32>
    %78 = arith.addf %76, %77 : vector<8x64xf32>
    %79 = arith.mulf %78, %68 : vector<8x64xf32>
    %cst_37 = arith.constant 0.254829586 : f32
    %80 = vector.broadcast %cst_37 : f32 to vector<8x64xf32>
    %81 = arith.addf %79, %80 : vector<8x64xf32>
    %82 = arith.mulf %81, %68 : vector<8x64xf32>
    %cst_38 = arith.constant 0.000000e+00 : f32
    %83 = vector.broadcast %cst_38 : f32 to vector<8x64xf32>
    %84 = arith.subf %83, %63 : vector<8x64xf32>
    %85 = arith.mulf %84, %63 : vector<8x64xf32>
    %86 = math.exp %85 : vector<8x64xf32>
    %87 = arith.mulf %82, %86 : vector<8x64xf32>
    %cst_39 = arith.constant 1.000000e+00 : f32
    %88 = vector.broadcast %cst_39 : f32 to vector<8x64xf32>
    %89 = arith.subf %88, %87 : vector<8x64xf32>
    %90 = arith.mulf %62, %89 : vector<8x64xf32>
    %cst_40 = arith.constant 5.000000e-01 : f32
    %91 = vector.broadcast %cst_40 : f32 to vector<8x64xf32>
    %92 = arith.mulf %91, %55 : vector<8x64xf32>
    %cst_41 = arith.constant 1.000000e+00 : f32
    %93 = vector.broadcast %cst_41 : f32 to vector<8x64xf32>
    %94 = arith.addf %93, %90 : vector<8x64xf32>
    %95 = arith.mulf %92, %94 : vector<8x64xf32>
    %c208 = arith.constant 208 : index
    %c0_42 = arith.constant 0 : index
    %96 = vector.load %arg5[%c208, %c0_42] : memref<440x128xf32, #tpu.memory_space<vmem>>, vector<64x64xf32>
    %cst_43 = arith.constant dense<0.000000e+00> : vector<8x64xf32>
    %97 = tpu.matmul %95, %96, %cst_43 {dimension_numbers = #tpu.dot_dimension_numbers<[1], [0], [0], [1], [0, 0, 1, 1], [], []>} : vector<8x64xf32>, vector<64x64xf32>, vector<8x64xf32> -> vector<8x64xf32>
    %c64 = arith.constant 64 : index
    %c0_44 = arith.constant 0 : index
    %98 = vector.load %arg6[%c64, %c0_44] : memref<104x128xf32, #tpu.memory_space<vmem>>, vector<1x64xf32>
    %99 = vector.broadcast %98 : vector<1x64xf32> to vector<8x64xf32>
    %100 = arith.addf %97, %99 : vector<8x64xf32>
    %cst_45 = arith.constant 0.707106769 : f32
    %101 = vector.broadcast %cst_45 : f32 to vector<8x64xf32>
    %102 = arith.mulf %100, %101 : vector<8x64xf32>
    %cst_46 = arith.constant 0.000000e+00 : f32
    %103 = vector.broadcast %cst_46 : f32 to vector<8x64xf32>
    %104 = arith.cmpf oge, %102, %103 : vector<8x64xf32>
    %cst_47 = arith.constant 1.000000e+00 : f32
    %cst_48 = arith.constant -1.000000e+00 : f32
    %105 = vector.broadcast %cst_47 : f32 to vector<8x64xf32>
    %106 = vector.broadcast %cst_48 : f32 to vector<8x64xf32>
    %107 = arith.select %104, %105, %106 : vector<8x64xi1>, vector<8x64xf32>
    %108 = math.absf %102 : vector<8x64xf32>
    %cst_49 = arith.constant 0.327591091 : f32
    %109 = vector.broadcast %cst_49 : f32 to vector<8x64xf32>
    %110 = arith.mulf %109, %108 : vector<8x64xf32>
    %cst_50 = arith.constant 1.000000e+00 : f32
    %111 = vector.broadcast %cst_50 : f32 to vector<8x64xf32>
    %112 = arith.addf %111, %110 : vector<8x64xf32>
    %113 = tpu.reciprocal %112 {approx = true} : vector<8x64xf32> -> vector<8x64xf32>
    %cst_51 = arith.constant 1.06140542 : f32
    %114 = vector.broadcast %cst_51 : f32 to vector<8x64xf32>
    %115 = arith.mulf %114, %113 : vector<8x64xf32>
    %cst_52 = arith.constant -1.45315206 : f32
    %116 = vector.broadcast %cst_52 : f32 to vector<8x64xf32>
    %117 = arith.addf %115, %116 : vector<8x64xf32>
    %118 = arith.mulf %117, %113 : vector<8x64xf32>
    %cst_53 = arith.constant 1.42141378 : f32
    %119 = vector.broadcast %cst_53 : f32 to vector<8x64xf32>
    %120 = arith.addf %118, %119 : vector<8x64xf32>
    %121 = arith.mulf %120, %113 : vector<8x64xf32>
    %cst_54 = arith.constant -0.284496725 : f32
    %122 = vector.broadcast %cst_54 : f32 to vector<8x64xf32>
    %123 = arith.addf %121, %122 : vector<8x64xf32>
    %124 = arith.mulf %123, %113 : vector<8x64xf32>
    %cst_55 = arith.constant 0.254829586 : f32
    %125 = vector.broadcast %cst_55 : f32 to vector<8x64xf32>
    %126 = arith.addf %124, %125 : vector<8x64xf32>
    %127 = arith.mulf %126, %113 : vector<8x64xf32>
    %cst_56 = arith.constant 0.000000e+00 : f32
    %128 = vector.broadcast %cst_56 : f32 to vector<8x64xf32>
    %129 = arith.subf %128, %108 : vector<8x64xf32>
    %130 = arith.mulf %129, %108 : vector<8x64xf32>
    %131 = math.exp %130 : vector<8x64xf32>
    %132 = arith.mulf %127, %131 : vector<8x64xf32>
    %cst_57 = arith.constant 1.000000e+00 : f32
    %133 = vector.broadcast %cst_57 : f32 to vector<8x64xf32>
    %134 = arith.subf %133, %132 : vector<8x64xf32>
    %135 = arith.mulf %107, %134 : vector<8x64xf32>
    %cst_58 = arith.constant 5.000000e-01 : f32
    %136 = vector.broadcast %cst_58 : f32 to vector<8x64xf32>
    %137 = arith.mulf %136, %100 : vector<8x64xf32>
    %cst_59 = arith.constant 1.000000e+00 : f32
    %138 = vector.broadcast %cst_59 : f32 to vector<8x64xf32>
    %139 = arith.addf %138, %135 : vector<8x64xf32>
    %140 = arith.mulf %137, %139 : vector<8x64xf32>
    %141 = arith.addf %95, %140 : vector<8x64xf32>
    %cst_60 = arith.constant 0.70721358 : f32
    %142 = vector.broadcast %cst_60 : f32 to vector<8x64xf32>
    %143 = arith.mulf %141, %142 : vector<8x64xf32>
    %c0_61 = arith.constant 0 : index
    %c0_62 = arith.constant 0 : index
    %144 = vector.load %arg2[%c0_61, %c0_62] : memref<8x8xf32, #tpu.memory_space<vmem>>, vector<8x8xf32>
    %c0_63 = arith.constant 0 : index
    %c0_64 = arith.constant 0 : index
    %145 = vector.load %arg4[%c0_63, %c0_64] : memref<8x1xf32, #tpu.memory_space<vmem>>, vector<8x1xf32>
    %cst_65 = arith.constant 1.000000e+00 : f32
    %146 = vector.broadcast %cst_65 : f32 to vector<8x1xf32>
    %147 = arith.subf %146, %145 : vector<8x1xf32>
    %148 = vector.broadcast %147 : vector<8x1xf32> to vector<8x8xf32>
    %149 = arith.mulf %144, %148 : vector<8x8xf32>
    %c104 = arith.constant 104 : index
    %c0_66 = arith.constant 0 : index
    %150 = vector.load %arg5[%c104, %c0_66] : memref<440x128xf32, #tpu.memory_space<vmem>>, vector<8x64xf32>
    %cst_67 = arith.constant dense<0.000000e+00> : vector<8x64xf32>
    %151 = tpu.matmul %149, %150, %cst_67 {dimension_numbers = #tpu.dot_dimension_numbers<[1], [0], [0], [1], [0, 0, 1, 1], [], []>} : vector<8x8xf32>, vector<8x64xf32>, vector<8x64xf32> -> vector<8x64xf32>
    %c40 = arith.constant 40 : index
    %c0_68 = arith.constant 0 : index
    %152 = vector.load %arg6[%c40, %c0_68] : memref<104x128xf32, #tpu.memory_space<vmem>>, vector<1x64xf32>
    %153 = vector.broadcast %152 : vector<1x64xf32> to vector<8x64xf32>
    %154 = arith.addf %151, %153 : vector<8x64xf32>
    %cst_69 = arith.constant 0.707106769 : f32
    %155 = vector.broadcast %cst_69 : f32 to vector<8x64xf32>
    %156 = arith.mulf %154, %155 : vector<8x64xf32>
    %cst_70 = arith.constant 0.000000e+00 : f32
    %157 = vector.broadcast %cst_70 : f32 to vector<8x64xf32>
    %158 = arith.cmpf oge, %156, %157 : vector<8x64xf32>
    %cst_71 = arith.constant 1.000000e+00 : f32
    %cst_72 = arith.constant -1.000000e+00 : f32
    %159 = vector.broadcast %cst_71 : f32 to vector<8x64xf32>
    %160 = vector.broadcast %cst_72 : f32 to vector<8x64xf32>
    %161 = arith.select %158, %159, %160 : vector<8x64xi1>, vector<8x64xf32>
    %162 = math.absf %156 : vector<8x64xf32>
    %cst_73 = arith.constant 0.327591091 : f32
    %163 = vector.broadcast %cst_73 : f32 to vector<8x64xf32>
    %164 = arith.mulf %163, %162 : vector<8x64xf32>
    %cst_74 = arith.constant 1.000000e+00 : f32
    %165 = vector.broadcast %cst_74 : f32 to vector<8x64xf32>
    %166 = arith.addf %165, %164 : vector<8x64xf32>
    %167 = tpu.reciprocal %166 {approx = true} : vector<8x64xf32> -> vector<8x64xf32>
    %cst_75 = arith.constant 1.06140542 : f32
    %168 = vector.broadcast %cst_75 : f32 to vector<8x64xf32>
    %169 = arith.mulf %168, %167 : vector<8x64xf32>
    %cst_76 = arith.constant -1.45315206 : f32
    %170 = vector.broadcast %cst_76 : f32 to vector<8x64xf32>
    %171 = arith.addf %169, %170 : vector<8x64xf32>
    %172 = arith.mulf %171, %167 : vector<8x64xf32>
    %cst_77 = arith.constant 1.42141378 : f32
    %173 = vector.broadcast %cst_77 : f32 to vector<8x64xf32>
    %174 = arith.addf %172, %173 : vector<8x64xf32>
    %175 = arith.mulf %174, %167 : vector<8x64xf32>
    %cst_78 = arith.constant -0.284496725 : f32
    %176 = vector.broadcast %cst_78 : f32 to vector<8x64xf32>
    %177 = arith.addf %175, %176 : vector<8x64xf32>
    %178 = arith.mulf %177, %167 : vector<8x64xf32>
    %cst_79 = arith.constant 0.254829586 : f32
    %179 = vector.broadcast %cst_79 : f32 to vector<8x64xf32>
    %180 = arith.addf %178, %179 : vector<8x64xf32>
    %181 = arith.mulf %180, %167 : vector<8x64xf32>
    %cst_80 = arith.constant 0.000000e+00 : f32
    %182 = vector.broadcast %cst_80 : f32 to vector<8x64xf32>
    %183 = arith.subf %182, %162 : vector<8x64xf32>
    %184 = arith.mulf %183, %162 : vector<8x64xf32>
    %185 = math.exp %184 : vector<8x64xf32>
    %186 = arith.mulf %181, %185 : vector<8x64xf32>
    %cst_81 = arith.constant 1.000000e+00 : f32
    %187 = vector.broadcast %cst_81 : f32 to vector<8x64xf32>
    %188 = arith.subf %187, %186 : vector<8x64xf32>
    %189 = arith.mulf %161, %188 : vector<8x64xf32>
    %cst_82 = arith.constant 5.000000e-01 : f32
    %190 = vector.broadcast %cst_82 : f32 to vector<8x64xf32>
    %191 = arith.mulf %190, %154 : vector<8x64xf32>
    %cst_83 = arith.constant 1.000000e+00 : f32
    %192 = vector.broadcast %cst_83 : f32 to vector<8x64xf32>
    %193 = arith.addf %192, %189 : vector<8x64xf32>
    %194 = arith.mulf %191, %193 : vector<8x64xf32>
    %c112 = arith.constant 112 : index
    %c0_84 = arith.constant 0 : index
    %195 = vector.load %arg5[%c112, %c0_84] : memref<440x128xf32, #tpu.memory_space<vmem>>, vector<64x64xf32>
    %cst_85 = arith.constant dense<0.000000e+00> : vector<8x64xf32>
    %196 = tpu.matmul %194, %195, %cst_85 {dimension_numbers = #tpu.dot_dimension_numbers<[1], [0], [0], [1], [0, 0, 1, 1], [], []>} : vector<8x64xf32>, vector<64x64xf32>, vector<8x64xf32> -> vector<8x64xf32>
    %c48 = arith.constant 48 : index
    %c0_86 = arith.constant 0 : index
    %197 = vector.load %arg6[%c48, %c0_86] : memref<104x128xf32, #tpu.memory_space<vmem>>, vector<1x64xf32>
    %198 = vector.broadcast %197 : vector<1x64xf32> to vector<8x64xf32>
    %199 = arith.addf %196, %198 : vector<8x64xf32>
    %c0_87 = arith.constant 0 : index
    %c0_88 = arith.constant 0 : index
    %200 = vector.load %arg3[%c0_87, %c0_88] : memref<8x1xf32, #tpu.memory_space<vmem>>, vector<8x1xf32>
    %c16 = arith.constant 16 : index
    %c0_89 = arith.constant 0 : index
    %201 = vector.load %arg6[%c16, %c0_89] : memref<104x128xf32, #tpu.memory_space<vmem>>, vector<1x64xf32>
    %202 = vector.broadcast %200 : vector<8x1xf32> to vector<8x64xf32>
    %203 = vector.broadcast %201 : vector<1x64xf32> to vector<8x64xf32>
    %204 = arith.mulf %202, %203 : vector<8x64xf32>
    %c24 = arith.constant 24 : index
    %c0_90 = arith.constant 0 : index
    %205 = vector.load %arg6[%c24, %c0_90] : memref<104x128xf32, #tpu.memory_space<vmem>>, vector<1x64xf32>
    %206 = vector.broadcast %205 : vector<1x64xf32> to vector<8x64xf32>
    %207 = arith.addf %204, %206 : vector<8x64xf32>
    %cst_91 = arith.constant 0.707106769 : f32
    %208 = vector.broadcast %cst_91 : f32 to vector<8x64xf32>
    %209 = arith.mulf %207, %208 : vector<8x64xf32>
    %cst_92 = arith.constant 0.000000e+00 : f32
    %210 = vector.broadcast %cst_92 : f32 to vector<8x64xf32>
    %211 = arith.cmpf oge, %209, %210 : vector<8x64xf32>
    %cst_93 = arith.constant 1.000000e+00 : f32
    %cst_94 = arith.constant -1.000000e+00 : f32
    %212 = vector.broadcast %cst_93 : f32 to vector<8x64xf32>
    %213 = vector.broadcast %cst_94 : f32 to vector<8x64xf32>
    %214 = arith.select %211, %212, %213 : vector<8x64xi1>, vector<8x64xf32>
    %215 = math.absf %209 : vector<8x64xf32>
    %cst_95 = arith.constant 0.327591091 : f32
    %216 = vector.broadcast %cst_95 : f32 to vector<8x64xf32>
    %217 = arith.mulf %216, %215 : vector<8x64xf32>
    %cst_96 = arith.constant 1.000000e+00 : f32
    %218 = vector.broadcast %cst_96 : f32 to vector<8x64xf32>
    %219 = arith.addf %218, %217 : vector<8x64xf32>
    %220 = tpu.reciprocal %219 {approx = true} : vector<8x64xf32> -> vector<8x64xf32>
    %cst_97 = arith.constant 1.06140542 : f32
    %221 = vector.broadcast %cst_97 : f32 to vector<8x64xf32>
    %222 = arith.mulf %221, %220 : vector<8x64xf32>
    %cst_98 = arith.constant -1.45315206 : f32
    %223 = vector.broadcast %cst_98 : f32 to vector<8x64xf32>
    %224 = arith.addf %222, %223 : vector<8x64xf32>
    %225 = arith.mulf %224, %220 : vector<8x64xf32>
    %cst_99 = arith.constant 1.42141378 : f32
    %226 = vector.broadcast %cst_99 : f32 to vector<8x64xf32>
    %227 = arith.addf %225, %226 : vector<8x64xf32>
    %228 = arith.mulf %227, %220 : vector<8x64xf32>
    %cst_100 = arith.constant -0.284496725 : f32
    %229 = vector.broadcast %cst_100 : f32 to vector<8x64xf32>
    %230 = arith.addf %228, %229 : vector<8x64xf32>
    %231 = arith.mulf %230, %220 : vector<8x64xf32>
    %cst_101 = arith.constant 0.254829586 : f32
    %232 = vector.broadcast %cst_101 : f32 to vector<8x64xf32>
    %233 = arith.addf %231, %232 : vector<8x64xf32>
    %234 = arith.mulf %233, %220 : vector<8x64xf32>
    %cst_102 = arith.constant 0.000000e+00 : f32
    %235 = vector.broadcast %cst_102 : f32 to vector<8x64xf32>
    %236 = arith.subf %235, %215 : vector<8x64xf32>
    %237 = arith.mulf %236, %215 : vector<8x64xf32>
    %238 = math.exp %237 : vector<8x64xf32>
    %239 = arith.mulf %234, %238 : vector<8x64xf32>
    %cst_103 = arith.constant 1.000000e+00 : f32
    %240 = vector.broadcast %cst_103 : f32 to vector<8x64xf32>
    %241 = arith.subf %240, %239 : vector<8x64xf32>
    %242 = arith.mulf %214, %241 : vector<8x64xf32>
    %cst_104 = arith.constant 5.000000e-01 : f32
    %243 = vector.broadcast %cst_104 : f32 to vector<8x64xf32>
    %244 = arith.mulf %243, %207 : vector<8x64xf32>
    %cst_105 = arith.constant 1.000000e+00 : f32
    %245 = vector.broadcast %cst_105 : f32 to vector<8x64xf32>
    %246 = arith.addf %245, %242 : vector<8x64xf32>
    %247 = arith.mulf %244, %246 : vector<8x64xf32>
    %c40_106 = arith.constant 40 : index
    %c0_107 = arith.constant 0 : index
    %248 = vector.load %arg5[%c40_106, %c0_107] : memref<440x128xf32, #tpu.memory_space<vmem>>, vector<64x64xf32>
    %cst_108 = arith.constant dense<0.000000e+00> : vector<8x64xf32>
    %249 = tpu.matmul %247, %248, %cst_108 {dimension_numbers = #tpu.dot_dimension_numbers<[1], [0], [0], [1], [0, 0, 1, 1], [], []>} : vector<8x64xf32>, vector<64x64xf32>, vector<8x64xf32> -> vector<8x64xf32>
    %c32 = arith.constant 32 : index
    %c0_109 = arith.constant 0 : index
    %250 = vector.load %arg6[%c32, %c0_109] : memref<104x128xf32, #tpu.memory_space<vmem>>, vector<1x64xf32>
    %251 = vector.broadcast %250 : vector<1x64xf32> to vector<8x64xf32>
    %252 = arith.addf %249, %251 : vector<8x64xf32>
    %253 = arith.mulf %199, %143 : vector<8x64xf32>
    %254 = arith.addf %253, %252 : vector<8x64xf32>
    %c272 = arith.constant 272 : index
    %c0_110 = arith.constant 0 : index
    %255 = vector.load %arg5[%c272, %c0_110] : memref<440x128xf32, #tpu.memory_space<vmem>>, vector<64x32xf32>
    %cst_111 = arith.constant dense<0.000000e+00> : vector<8x32xf32>
    %256 = tpu.matmul %254, %255, %cst_111 {dimension_numbers = #tpu.dot_dimension_numbers<[1], [0], [0], [1], [0, 0, 1, 1], [], []>} : vector<8x64xf32>, vector<64x32xf32>, vector<8x32xf32> -> vector<8x32xf32>
    %c72 = arith.constant 72 : index
    %c0_112 = arith.constant 0 : index
    %257 = vector.load %arg6[%c72, %c0_112] : memref<104x128xf32, #tpu.memory_space<vmem>>, vector<1x32xf32>
    %258 = vector.broadcast %257 : vector<1x32xf32> to vector<8x32xf32>
    %259 = arith.addf %256, %258 : vector<8x32xf32>
    %cst_113 = arith.constant 0.707106769 : f32
    %260 = vector.broadcast %cst_113 : f32 to vector<8x32xf32>
    %261 = arith.mulf %259, %260 : vector<8x32xf32>
    %cst_114 = arith.constant 0.000000e+00 : f32
    %262 = vector.broadcast %cst_114 : f32 to vector<8x32xf32>
    %263 = arith.cmpf oge, %261, %262 : vector<8x32xf32>
    %cst_115 = arith.constant 1.000000e+00 : f32
    %cst_116 = arith.constant -1.000000e+00 : f32
    %264 = vector.broadcast %cst_115 : f32 to vector<8x32xf32>
    %265 = vector.broadcast %cst_116 : f32 to vector<8x32xf32>
    %266 = arith.select %263, %264, %265 : vector<8x32xi1>, vector<8x32xf32>
    %267 = math.absf %261 : vector<8x32xf32>
    %cst_117 = arith.constant 0.327591091 : f32
    %268 = vector.broadcast %cst_117 : f32 to vector<8x32xf32>
    %269 = arith.mulf %268, %267 : vector<8x32xf32>
    %cst_118 = arith.constant 1.000000e+00 : f32
    %270 = vector.broadcast %cst_118 : f32 to vector<8x32xf32>
    %271 = arith.addf %270, %269 : vector<8x32xf32>
    %272 = tpu.reciprocal %271 {approx = true} : vector<8x32xf32> -> vector<8x32xf32>
    %cst_119 = arith.constant 1.06140542 : f32
    %273 = vector.broadcast %cst_119 : f32 to vector<8x32xf32>
    %274 = arith.mulf %273, %272 : vector<8x32xf32>
    %cst_120 = arith.constant -1.45315206 : f32
    %275 = vector.broadcast %cst_120 : f32 to vector<8x32xf32>
    %276 = arith.addf %274, %275 : vector<8x32xf32>
    %277 = arith.mulf %276, %272 : vector<8x32xf32>
    %cst_121 = arith.constant 1.42141378 : f32
    %278 = vector.broadcast %cst_121 : f32 to vector<8x32xf32>
    %279 = arith.addf %277, %278 : vector<8x32xf32>
    %280 = arith.mulf %279, %272 : vector<8x32xf32>
    %cst_122 = arith.constant -0.284496725 : f32
    %281 = vector.broadcast %cst_122 : f32 to vector<8x32xf32>
    %282 = arith.addf %280, %281 : vector<8x32xf32>
    %283 = arith.mulf %282, %272 : vector<8x32xf32>
    %cst_123 = arith.constant 0.254829586 : f32
    %284 = vector.broadcast %cst_123 : f32 to vector<8x32xf32>
    %285 = arith.addf %283, %284 : vector<8x32xf32>
    %286 = arith.mulf %285, %272 : vector<8x32xf32>
    %cst_124 = arith.constant 0.000000e+00 : f32
    %287 = vector.broadcast %cst_124 : f32 to vector<8x32xf32>
    %288 = arith.subf %287, %267 : vector<8x32xf32>
    %289 = arith.mulf %288, %267 : vector<8x32xf32>
    %290 = math.exp %289 : vector<8x32xf32>
    %291 = arith.mulf %286, %290 : vector<8x32xf32>
    %cst_125 = arith.constant 1.000000e+00 : f32
    %292 = vector.broadcast %cst_125 : f32 to vector<8x32xf32>
    %293 = arith.subf %292, %291 : vector<8x32xf32>
    %294 = arith.mulf %266, %293 : vector<8x32xf32>
    %cst_126 = arith.constant 5.000000e-01 : f32
    %295 = vector.broadcast %cst_126 : f32 to vector<8x32xf32>
    %296 = arith.mulf %295, %259 : vector<8x32xf32>
    %cst_127 = arith.constant 1.000000e+00 : f32
    %297 = vector.broadcast %cst_127 : f32 to vector<8x32xf32>
    %298 = arith.addf %297, %294 : vector<8x32xf32>
    %299 = arith.mulf %296, %298 : vector<8x32xf32>
    %c336 = arith.constant 336 : index
    %c0_128 = arith.constant 0 : index
    %300 = vector.load %arg5[%c336, %c0_128] : memref<440x128xf32, #tpu.memory_space<vmem>>, vector<32x32xf32>
    %cst_129 = arith.constant dense<0.000000e+00> : vector<8x32xf32>
    %301 = tpu.matmul %299, %300, %cst_129 {dimension_numbers = #tpu.dot_dimension_numbers<[1], [0], [0], [1], [0, 0, 1, 1], [], []>} : vector<8x32xf32>, vector<32x32xf32>, vector<8x32xf32> -> vector<8x32xf32>
    %c80 = arith.constant 80 : index
    %c0_130 = arith.constant 0 : index
    %302 = vector.load %arg6[%c80, %c0_130] : memref<104x128xf32, #tpu.memory_space<vmem>>, vector<1x32xf32>
    %303 = vector.broadcast %302 : vector<1x32xf32> to vector<8x32xf32>
    %304 = arith.addf %301, %303 : vector<8x32xf32>
    %cst_131 = arith.constant 0.707106769 : f32
    %305 = vector.broadcast %cst_131 : f32 to vector<8x32xf32>
    %306 = arith.mulf %304, %305 : vector<8x32xf32>
    %cst_132 = arith.constant 0.000000e+00 : f32
    %307 = vector.broadcast %cst_132 : f32 to vector<8x32xf32>
    %308 = arith.cmpf oge, %306, %307 : vector<8x32xf32>
    %cst_133 = arith.constant 1.000000e+00 : f32
    %cst_134 = arith.constant -1.000000e+00 : f32
    %309 = vector.broadcast %cst_133 : f32 to vector<8x32xf32>
    %310 = vector.broadcast %cst_134 : f32 to vector<8x32xf32>
    %311 = arith.select %308, %309, %310 : vector<8x32xi1>, vector<8x32xf32>
    %312 = math.absf %306 : vector<8x32xf32>
    %cst_135 = arith.constant 0.327591091 : f32
    %313 = vector.broadcast %cst_135 : f32 to vector<8x32xf32>
    %314 = arith.mulf %313, %312 : vector<8x32xf32>
    %cst_136 = arith.constant 1.000000e+00 : f32
    %315 = vector.broadcast %cst_136 : f32 to vector<8x32xf32>
    %316 = arith.addf %315, %314 : vector<8x32xf32>
    %317 = tpu.reciprocal %316 {approx = true} : vector<8x32xf32> -> vector<8x32xf32>
    %cst_137 = arith.constant 1.06140542 : f32
    %318 = vector.broadcast %cst_137 : f32 to vector<8x32xf32>
    %319 = arith.mulf %318, %317 : vector<8x32xf32>
    %cst_138 = arith.constant -1.45315206 : f32
    %320 = vector.broadcast %cst_138 : f32 to vector<8x32xf32>
    %321 = arith.addf %319, %320 : vector<8x32xf32>
    %322 = arith.mulf %321, %317 : vector<8x32xf32>
    %cst_139 = arith.constant 1.42141378 : f32
    %323 = vector.broadcast %cst_139 : f32 to vector<8x32xf32>
    %324 = arith.addf %322, %323 : vector<8x32xf32>
    %325 = arith.mulf %324, %317 : vector<8x32xf32>
    %cst_140 = arith.constant -0.284496725 : f32
    %326 = vector.broadcast %cst_140 : f32 to vector<8x32xf32>
    %327 = arith.addf %325, %326 : vector<8x32xf32>
    %328 = arith.mulf %327, %317 : vector<8x32xf32>
    %cst_141 = arith.constant 0.254829586 : f32
    %329 = vector.broadcast %cst_141 : f32 to vector<8x32xf32>
    %330 = arith.addf %328, %329 : vector<8x32xf32>
    %331 = arith.mulf %330, %317 : vector<8x32xf32>
    %cst_142 = arith.constant 0.000000e+00 : f32
    %332 = vector.broadcast %cst_142 : f32 to vector<8x32xf32>
    %333 = arith.subf %332, %312 : vector<8x32xf32>
    %334 = arith.mulf %333, %312 : vector<8x32xf32>
    %335 = math.exp %334 : vector<8x32xf32>
    %336 = arith.mulf %331, %335 : vector<8x32xf32>
    %cst_143 = arith.constant 1.000000e+00 : f32
    %337 = vector.broadcast %cst_143 : f32 to vector<8x32xf32>
    %338 = arith.subf %337, %336 : vector<8x32xf32>
    %339 = arith.mulf %311, %338 : vector<8x32xf32>
    %cst_144 = arith.constant 5.000000e-01 : f32
    %340 = vector.broadcast %cst_144 : f32 to vector<8x32xf32>
    %341 = arith.mulf %340, %304 : vector<8x32xf32>
    %cst_145 = arith.constant 1.000000e+00 : f32
    %342 = vector.broadcast %cst_145 : f32 to vector<8x32xf32>
    %343 = arith.addf %342, %339 : vector<8x32xf32>
    %344 = arith.mulf %341, %343 : vector<8x32xf32>
    %345 = arith.addf %299, %344 : vector<8x32xf32>
    %cst_146 = arith.constant 0.70721358 : f32
    %346 = vector.broadcast %cst_146 : f32 to vector<8x32xf32>
    %347 = arith.mulf %345, %346 : vector<8x32xf32>
    %c368 = arith.constant 368 : index
    %c0_147 = arith.constant 0 : index
    %348 = vector.load %arg5[%c368, %c0_147] : memref<440x128xf32, #tpu.memory_space<vmem>>, vector<32x4xf32>
    %cst_148 = arith.constant dense<0.000000e+00> : vector<8x4xf32>
    %349 = tpu.matmul %347, %348, %cst_148 {dimension_numbers = #tpu.dot_dimension_numbers<[1], [0], [0], [1], [0, 0, 1, 1], [], []>} : vector<8x32xf32>, vector<32x4xf32>, vector<8x4xf32> -> vector<8x4xf32>
    %c400 = arith.constant 400 : index
    %c0_149 = arith.constant 0 : index
    %350 = vector.load %arg5[%c400, %c0_149] : memref<440x128xf32, #tpu.memory_space<vmem>>, vector<32x4xf32>
    %cst_150 = arith.constant dense<0.000000e+00> : vector<8x4xf32>
    %351 = tpu.matmul %50, %350, %cst_150 {dimension_numbers = #tpu.dot_dimension_numbers<[1], [0], [0], [1], [0, 0, 1, 1], [], []>} : vector<8x32xf32>, vector<32x4xf32>, vector<8x4xf32> -> vector<8x4xf32>
    %352 = arith.addf %349, %351 : vector<8x4xf32>
    %c88 = arith.constant 88 : index
    %c0_151 = arith.constant 0 : index
    %353 = vector.load %arg6[%c88, %c0_151] : memref<104x128xf32, #tpu.memory_space<vmem>>, vector<1x4xf32>
    %354 = vector.broadcast %353 : vector<1x4xf32> to vector<8x4xf32>
    %355 = arith.addf %352, %354 : vector<8x4xf32>
    %cst_152 = arith.constant 0.707106769 : f32
    %356 = vector.broadcast %cst_152 : f32 to vector<8x4xf32>
    %357 = arith.mulf %355, %356 : vector<8x4xf32>
    %cst_153 = arith.constant 0.000000e+00 : f32
    %358 = vector.broadcast %cst_153 : f32 to vector<8x4xf32>
    %359 = arith.cmpf oge, %357, %358 : vector<8x4xf32>
    %cst_154 = arith.constant 1.000000e+00 : f32
    %cst_155 = arith.constant -1.000000e+00 : f32
    %360 = vector.broadcast %cst_154 : f32 to vector<8x4xf32>
    %361 = vector.broadcast %cst_155 : f32 to vector<8x4xf32>
    %362 = arith.select %359, %360, %361 : vector<8x4xi1>, vector<8x4xf32>
    %363 = math.absf %357 : vector<8x4xf32>
    %cst_156 = arith.constant 0.327591091 : f32
    %364 = vector.broadcast %cst_156 : f32 to vector<8x4xf32>
    %365 = arith.mulf %364, %363 : vector<8x4xf32>
    %cst_157 = arith.constant 1.000000e+00 : f32
    %366 = vector.broadcast %cst_157 : f32 to vector<8x4xf32>
    %367 = arith.addf %366, %365 : vector<8x4xf32>
    %368 = tpu.reciprocal %367 {approx = true} : vector<8x4xf32> -> vector<8x4xf32>
    %cst_158 = arith.constant 1.06140542 : f32
    %369 = vector.broadcast %cst_158 : f32 to vector<8x4xf32>
    %370 = arith.mulf %369, %368 : vector<8x4xf32>
    %cst_159 = arith.constant -1.45315206 : f32
    %371 = vector.broadcast %cst_159 : f32 to vector<8x4xf32>
    %372 = arith.addf %370, %371 : vector<8x4xf32>
    %373 = arith.mulf %372, %368 : vector<8x4xf32>
    %cst_160 = arith.constant 1.42141378 : f32
    %374 = vector.broadcast %cst_160 : f32 to vector<8x4xf32>
    %375 = arith.addf %373, %374 : vector<8x4xf32>
    %376 = arith.mulf %375, %368 : vector<8x4xf32>
    %cst_161 = arith.constant -0.284496725 : f32
    %377 = vector.broadcast %cst_161 : f32 to vector<8x4xf32>
    %378 = arith.addf %376, %377 : vector<8x4xf32>
    %379 = arith.mulf %378, %368 : vector<8x4xf32>
    %cst_162 = arith.constant 0.254829586 : f32
    %380 = vector.broadcast %cst_162 : f32 to vector<8x4xf32>
    %381 = arith.addf %379, %380 : vector<8x4xf32>
    %382 = arith.mulf %381, %368 : vector<8x4xf32>
    %cst_163 = arith.constant 0.000000e+00 : f32
    %383 = vector.broadcast %cst_163 : f32 to vector<8x4xf32>
    %384 = arith.subf %383, %363 : vector<8x4xf32>
    %385 = arith.mulf %384, %363 : vector<8x4xf32>
    %386 = math.exp %385 : vector<8x4xf32>
    %387 = arith.mulf %382, %386 : vector<8x4xf32>
    %cst_164 = arith.constant 1.000000e+00 : f32
    %388 = vector.broadcast %cst_164 : f32 to vector<8x4xf32>
    %389 = arith.subf %388, %387 : vector<8x4xf32>
    %390 = arith.mulf %362, %389 : vector<8x4xf32>
    %cst_165 = arith.constant 5.000000e-01 : f32
    %391 = vector.broadcast %cst_165 : f32 to vector<8x4xf32>
    %392 = arith.mulf %391, %355 : vector<8x4xf32>
    %cst_166 = arith.constant 1.000000e+00 : f32
    %393 = vector.broadcast %cst_166 : f32 to vector<8x4xf32>
    %394 = arith.addf %393, %390 : vector<8x4xf32>
    %395 = arith.mulf %392, %394 : vector<8x4xf32>
    %c432 = arith.constant 432 : index
    %c0_167 = arith.constant 0 : index
    %396 = vector.load %arg5[%c432, %c0_167] : memref<440x128xf32, #tpu.memory_space<vmem>>, vector<4x128xf32>
    %cst_168 = arith.constant dense<0.000000e+00> : vector<8x128xf32>
    %397 = tpu.matmul %395, %396, %cst_168 {dimension_numbers = #tpu.dot_dimension_numbers<[1], [0], [0], [1], [0, 0, 1, 1], [], []>} : vector<8x4xf32>, vector<4x128xf32>, vector<8x128xf32> -> vector<8x128xf32>
    %c96 = arith.constant 96 : index
    %c0_169 = arith.constant 0 : index
    %398 = vector.load %arg6[%c96, %c0_169] : memref<104x128xf32, #tpu.memory_space<vmem>>, vector<1x128xf32>
    %399 = vector.broadcast %398 : vector<1x128xf32> to vector<8x128xf32>
    %400 = arith.addf %397, %399 : vector<8x128xf32>
    %c0_170 = arith.constant 0 : index
    %c0_171 = arith.constant 0 : index
    %401 = vector.load %arg7[%c0_170, %c0_171] : memref<8x128xf32, #tpu.memory_space<vmem>>, vector<8x128xf32>
    tpu.vector_store %arg7[%c0_170, %c0_171], %400 {strides = array<i32>} : memref<8x128xf32, #tpu.memory_space<vmem>>, vector<8x128xf32>,
    return
  }
  func.func @transform_0(%arg0: i32) -> (i32, i32) {
    %c0_i32 = arith.constant 0 : i32
    %c0_i32_0 = arith.constant 0 : i32
    return %arg0, %c0_i32 : i32, i32
  }
  func.func @transform_1(%arg0: i32) -> (i32, i32) {
    %c0_i32 = arith.constant 0 : i32
    %c0_i32_0 = arith.constant 0 : i32
    return %arg0, %c0_i32 : i32, i32
  }
  func.func @transform_2(%arg0: i32) -> (i32, i32) {
    %c0_i32 = arith.constant 0 : i32
    %c0_i32_0 = arith.constant 0 : i32
    return %arg0, %c0_i32 : i32, i32
  }
  func.func @transform_3(%arg0: i32) -> (i32, i32) {
    %c0_i32 = arith.constant 0 : i32
    %c0_i32_0 = arith.constant 0 : i32
    return %arg0, %c0_i32 : i32, i32
  }
  func.func @transform_4(%arg0: i32) -> (i32, i32) {
    %c0_i32 = arith.constant 0 : i32
    %c0_i32_0 = arith.constant 0 : i32
    %c0_i32_1 = arith.constant 0 : i32
    return %c0_i32, %c0_i32_0 : i32, i32
  }
  func.func @transform_5(%arg0: i32) -> (i32, i32) {
    %c0_i32 = arith.constant 0 : i32
    %c0_i32_0 = arith.constant 0 : i32
    %c0_i32_1 = arith.constant 0 : i32
    return %c0_i32, %c0_i32_0 : i32, i32
  }
  func.func @transform_6(%arg0: i32) -> (i32, i32) {
    %c0_i32 = arith.constant 0 : i32
    %c0_i32_0 = arith.constant 0 : i32
    return %arg0, %c0_i32 : i32, i32
  }
}

</mosaic_0001>

<llo_original>
// kernel: tpu_custom_call.1
$region0: #{tpu_custom_call.1}
  #allocation0 [shape = 'u32[]', space=smem, size = 0x4, offset = 0x4, fixed_abs, tag = 'smem constant byte address 0x4 - core index']
  #allocation1 [shape = 'u32[72,128]{1,0:T(1,128)}', space=vmem, size = 0x9000, scoped, tag = 'internal scratch']
  %s0 = inlined_call_operand.vmem [shape: f32[8,4], index: 0, kind: input, shape index: {}]
  %s1 = inlined_call_operand.vmem [shape: f32[8,8], index: 1, kind: input, shape index: {}]
  %s2 = inlined_call_operand.vmem [shape: f32[8,1], index: 2, kind: input, shape index: {}]
  %s3 = inlined_call_operand.vmem [shape: f32[8,1], index: 3, kind: input, shape index: {}]
  %s4 = inlined_call_operand.hbm [shape: f32[440,128], index: 4, kind: input, shape index: {}]
  %s5 = inlined_call_operand.hbm [shape: f32[104,128], index: 5, kind: input, shape index: {}]
  %s6 = inlined_call_operand.hbm [shape: f32[8,128], index: 6, kind: output, shape index: {}]
  %s7 = sld [smem:[#allocation0]]
  $region42: #{tpu_custom_call.1} parent=0
    _
  %s9 = ssub.s32 1, %s7
  %s10 = scalar_select 0, %s9, %s7
  $region1: #{tpu_custom_call.1} parent=0
    #allocation2 [shape = 'u8[225280]{0}', space=vmem, size = 0x37000, scoped, tag = 'input window, operand 4, single buffered']
    #allocation3 [shape = 's32[1]{0}', space=sflag, size = 0x4, scoped, tag = 'scoped memory for tpu_custom_call.1']
    #allocation4 [shape = 's32[1]{0}', space=sflag, size = 0x4, scoped, tag = 'scoped memory for tpu_custom_call.1']
    #allocation5 [shape = 'u8[53248]{0}', space=vmem, size = 0xd000, scoped, tag = 'input window, operand 5, single buffered']
    #allocation6 [shape = 's32[1]{0}', space=sflag, size = 0x4, scoped, tag = 'scoped memory for tpu_custom_call.1']
    #allocation7 [shape = 'u8[4096]{0}', space=vmem, size = 0x1000, scoped, tag = 'output window, operand 0, single buffered']
    %11 = vsyncpa [#allocation3], 0
    %12 = vsyncpa [#allocation6], 0
    %13 = vsyncpa [#allocation4], 0
    // Predicated region
    $region2: #{tpu_custom_call.1} parent=1 // pred_check
      _
    $region3: #{tpu_custom_call.1} parent=1 // pred_check_branch
      %15 = sbr.rel (0) target = $region5
    $region4: #{tpu_custom_call.1} parent=1 // pred_region
      _
    $region5: #{tpu_custom_call.1} parent=1 // pred_fallthru
      _
    // Predicated region
    $region6: #{tpu_custom_call.1} parent=1 // pred_check
      _
    $region7: #{tpu_custom_call.1} parent=1 // pred_check_branch
      %17 = sbr.rel (0) target = $region9
    $region8: #{tpu_custom_call.1} parent=1 // pred_region
      _
    $region9: #{tpu_custom_call.1} parent=1 // pred_fallthru
      _
    // Predicated region
    $region10: #{tpu_custom_call.1} parent=1 // pred_check
      _
    $region11: #{tpu_custom_call.1} parent=1 // pred_check_branch
      %19 = sbr.rel (0) target = $region13
    $region12: #{tpu_custom_call.1} parent=1 // pred_region
      _
    $region13: #{tpu_custom_call.1} parent=1 // pred_fallthru
      _
    // Predicated region
    $region14: #{tpu_custom_call.1} parent=1 // pred_check
      _
    $region15: #{tpu_custom_call.1} parent=1 // pred_check_branch
      %21 = sbr.rel (0) target = $region17
    $region16: #{tpu_custom_call.1} parent=1 // pred_region
      _
    $region17: #{tpu_custom_call.1} parent=1 // pred_fallthru
      _
    // Predicated region
    $region18: #{tpu_custom_call.1} parent=1 // pred_check
      _
    $region19: #{tpu_custom_call.1} parent=1 // pred_check_branch
      %23 = sbr.rel (0) target = $region21
    $region20: #{tpu_custom_call.1} parent=1 // pred_region
      %25 = vsyncadd [#allocation3], 0
      %s26 = sshll.u32 %s4, 4
      %s27 = int_to_ptr.hbm [resolvable:$true] %s26
      %s28 = sshll.u32 [#allocation2], 4
      %s29 = int_to_ptr.vmem [resolvable:$true] %s28
      %34 = dma.hbm_to_vmem [thread:$0]  %s27, 7040, %s29, [#allocation3], 128, 128, 8
    $region21: #{tpu_custom_call.1} parent=1 // pred_fallthru
      _
    // Predicated region
    $region22: #{tpu_custom_call.1} parent=1 // pred_check
      _
    $region23: #{tpu_custom_call.1} parent=1 // pred_check_branch
      %36 = sbr.rel (0) target = $region25
    $region24: #{tpu_custom_call.1} parent=1 // pred_region
      %38 = vsyncadd [#allocation6], 0
      %s39 = sshll.u32 %s5, 4
      %s40 = int_to_ptr.hbm [resolvable:$true] %s39
      %s41 = sshll.u32 [#allocation5], 4
      %s42 = int_to_ptr.vmem [resolvable:$true] %s41
      %47 = dma.hbm_to_vmem [thread:$0]  %s40, 1664, %s42, [#allocation6], 128, 128, 8
    $region25: #{tpu_custom_call.1} parent=1 // pred_fallthru
      _
    // Predicated region
    $region26: #{tpu_custom_call.1} parent=1 // pred_check
      _
    $region27: #{tpu_custom_call.1} parent=1 // pred_check_branch
      %49 = sbr.rel (0) target = $region29
    $region28: #{tpu_custom_call.1} parent=1 // pred_region
      %51 = dma.done [#allocation3], 7040
    $region29: #{tpu_custom_call.1} parent=1 // pred_fallthru
      _
    // Predicated region
    $region30: #{tpu_custom_call.1} parent=1 // pred_check
      _
    $region31: #{tpu_custom_call.1} parent=1 // pred_check_branch
      %53 = sbr.rel (0) target = $region33
    $region32: #{tpu_custom_call.1} parent=1 // pred_region
      %55 = dma.done [#allocation6], 1664
    $region33: #{tpu_custom_call.1} parent=1 // pred_fallthru
      _
    %v56 = vld [vmem:[%s0] sm:$0xff]
    %v57 = vld [vmem:[#allocation2] sm:$0xf]
    %v58 = vld [vmem:[#allocation5] sm:$0x1]
    %v59 = vperm.slane %v58, 0
    %vm60 = vcmask 31744
    %v62 = vsel %vm60, %v56, 0
    %vm64 = vcmask 1043456
    %v66 = vsel %vm64, %v57, 0
    %68 = vmatpush.msra.mxu0 0.0
    %69 = vmatpush.msra.mxu0 0.0
    %70 = vmatpush.msra.mxu0 0.0
    %71 = vmatpush.msra.mxu0 0.0
    %72 = vmatpush.msra.mxu0 0.0
    %73 = vmatpush.msra.mxu0 0.0
    %74 = vmatpush.msra.mxu0 0.0
    %75 = vmatpush.msra.mxu0 0.0
    %76 = vmatpush.msra.mxu0 0.0
    %77 = vmatpush.msra.mxu0 0.0
    %78 = vmatpush.msra.mxu0 0.0
    %79 = vmatpush.msra.mxu0 0.0
    %80 = vmatpush.msra.mxu0 0.0
    %81 = vmatpush.msra.mxu0 0.0
    %82 = vmatpush.msra.mxu0 0.0
    %83 = vmatpush.msra.mxu0 %v66
    %84 = vmatmul.f32.gmra.mxu0 %v62
    %v85 = vpop.f32.mrf.mxu0
    %v86 = vadd.f32 %v59, %v85
    %87 = vdwg.mxu0
    %v88 = vmul.f32 %v86, 0.70710677
    %vm89 = vcmp.ge.f32.partialorder %v88, 0.0
    %v90 = vsel %vm89, 1.0, -1.0
    %v91 = vand.u32 2147483647, %v88
    %v92 = vmul.f32 %v91, 0.3275911
    %v93 = vadd.f32 %v92, 1.0
    %v94 = vrcp.pop %v93
    %v95 = vmul.f32 %v94, 1.0614054
    %v96 = vadd.f32 %v95, -1.4531521
    %v97 = vmul.f32 %v96, %v94
    %v98 = vadd.f32 %v97, 1.4214138
    %v99 = vmul.f32 %v98, %v94
    %v100 = vadd.f32 %v99, -0.28449672
    %v101 = vmul.f32 %v100, %v94
    %v102 = vadd.f32 %v101, 0.2548296
    %v103 = vmul.f32 %v102, %v94
    %v104 = vsub.f32 0.0, %v91
    %v105 = vmul.f32 %v104, %v91
    %v106 = vmul.f32 %v105, 1.442695
    %v107 = vpow.pop %v106
    %v108 = vmul.f32 %v103, %v107
    %v109 = vsub.f32 1.0, %v108
    %v110 = vmul.f32 %v90, %v109
    %v111 = vmul.f32 %v86, 0.5
    %v112 = vadd.f32 %v110, 1.0
    %v113 = vmul.f32 %v111, %v112
    %v114 = vld [vmem:[#allocation2 + $0x8] sm:$0xff]
    %v115 = vld [vmem:[#allocation2 + $0x10] sm:$0xff]
    %v116 = vld [vmem:[#allocation2 + $0x18] sm:$0xff]
    %v117 = vld [vmem:[#allocation2 + $0x20] sm:$0xff]
    %v118 = vld [vmem:[#allocation5 + $0x8] sm:$0x1]
    %v119 = vperm.slane %v118, 0
    %vm120 = vcmask 261120
    %v122 = vsel %vm120, %v113, 0
    %124 = vmatpush.msra.mxu0 0.0
    %125 = vmatpush.msra.mxu0 0.0
    %126 = vmatpush.msra.mxu0 0.0
    %127 = vmatpush.msra.mxu0 0.0
    %128 = vmatpush.msra.mxu0 0.0
    %129 = vmatpush.msra.mxu0 0.0
    %130 = vmatpush.msra.mxu0 0.0
    %131 = vmatpush.msra.mxu0 0.0
    %132 = vmatpush.msra.mxu0 0.0
    %133 = vmatpush.msra.mxu0 0.0
    %134 = vmatpush.msra.mxu0 0.0
    %135 = vmatpush.msra.mxu0 0.0
    %136 = vmatpush.msra.mxu0 %v117
    %137 = vmatpush.msra.mxu0 %v116
    %138 = vmatpush.msra.mxu0 %v115
    %139 = vmatpush.msra.mxu0 %v114
    %140 = vmatmul.f32.gmra.mxu0 %v122
    %v141 = vpop.f32.mrf.mxu0
    %v142 = vadd.f32 %v119, %v141
    %143 = vdwg.mxu0
    %v144 = vld [vmem:[#allocation2 + $0xb0] sm:$0xff]
    %v145 = vld [vmem:[#allocation2 + $0xb8] sm:$0xff]
    %v146 = vld [vmem:[#allocation2 + $0xc0] sm:$0xff]
    %v147 = vld [vmem:[#allocation2 + $0xc8] sm:$0xff]
    %v148 = vld [vmem:[#allocation5 + $0x38] sm:$0x1]
    %v149 = vperm.slane %v148, 0
    %v151 = vsel %vm120, %v142, 0
    %153 = vmatpush.msra.mxu0 0.0
    %154 = vmatpush.msra.mxu0 0.0
    %155 = vmatpush.msra.mxu0 0.0
    %156 = vmatpush.msra.mxu0 0.0
    %157 = vmatpush.msra.mxu0 0.0
    %158 = vmatpush.msra.mxu0 0.0
    %159 = vmatpush.msra.mxu0 0.0
    %160 = vmatpush.msra.mxu0 0.0
    %161 = vmatpush.msra.mxu0 0.0
    %162 = vmatpush.msra.mxu0 0.0
    %163 = vmatpush.msra.mxu0 0.0
    %164 = vmatpush.msra.mxu0 0.0
    %165 = vmatpush.msra.mxu0 %v147
    %166 = vmatpush.msra.mxu0 %v146
    %167 = vmatpush.msra.mxu0 %v145
    %168 = vmatpush.msra.mxu0 %v144
    %169 = vmatmul.f32.gmra.mxu0 %v151
    %v170 = vpop.f32.mrf.mxu0
    %v171 = vadd.f32 %v149, %v170
    %172 = vdwg.mxu0
    %v173 = vmul.f32 %v171, 0.70710677
    %vm174 = vcmp.ge.f32.partialorder %v173, 0.0
    %v175 = vsel %vm174, 1.0, -1.0
    %v176 = vand.u32 2147483647, %v173
    %v177 = vmul.f32 %v176, 0.3275911
    %v178 = vadd.f32 %v177, 1.0
    %v179 = vrcp.pop %v178
    %v180 = vmul.f32 %v179, 1.0614054
    %v181 = vadd.f32 %v180, -1.4531521
    %v182 = vmul.f32 %v181, %v179
    %v183 = vadd.f32 %v182, 1.4214138
    %v184 = vmul.f32 %v183, %v179
    %v185 = vadd.f32 %v184, -0.28449672
    %v186 = vmul.f32 %v185, %v179
    %v187 = vadd.f32 %v186, 0.2548296
    %v188 = vmul.f32 %v187, %v179
    %v189 = vsub.f32 0.0, %v176
    %v190 = vmul.f32 %v189, %v176
    %v191 = vmul.f32 %v190, 1.442695
    %v192 = vpow.pop %v191
    %v193 = vmul.f32 %v188, %v192
    %v194 = vsub.f32 1.0, %v193
    %v195 = vmul.f32 %v175, %v194
    %v196 = vmul.f32 %v171, 0.5
    %v197 = vadd.f32 %v195, 1.0
    %v198 = vmul.f32 %v196, %v197
    %v199 = vld [vmem:[#allocation2 + $0xd0] sm:$0xff]
    %v200 = vld [vmem:[#allocation2 + $0xd8] sm:$0xff]
    %v201 = vld [vmem:[#allocation2 + $0xe0] sm:$0xff]
    %v202 = vld [vmem:[#allocation2 + $0xe8] sm:$0xff]
    %v203 = vld [vmem:[#allocation2 + $0xf0] sm:$0xff]
    %v204 = vld [vmem:[#allocation2 + $0xf8] sm:$0xff]
    %v205 = vld [vmem:[#allocation2 + $0x100] sm:$0xff]
    %v206 = vld [vmem:[#allocation2 + $0x108] sm:$0xff]
    %v207 = vld [vmem:[#allocation5 + $0x40] sm:$0x1]
    %v208 = vperm.slane %v207, 0
    %vm209 = vcmask 523264
    %v211 = vsel %vm209, %v198, 0
    %213 = vmatpush.msra.mxu0 0.0
    %214 = vmatpush.msra.mxu0 0.0
    %215 = vmatpush.msra.mxu0 0.0
    %216 = vmatpush.msra.mxu0 0.0
    %217 = vmatpush.msra.mxu0 0.0
    %218 = vmatpush.msra.mxu0 0.0
    %219 = vmatpush.msra.mxu0 0.0
    %220 = vmatpush.msra.mxu0 0.0
    %221 = vmatpush.msra.mxu0 %v206
    %222 = vmatpush.msra.mxu0 %v205
    %223 = vmatpush.msra.mxu0 %v204
    %224 = vmatpush.msra.mxu0 %v203
    %225 = vmatpush.msra.mxu0 %v202
    %226 = vmatpush.msra.mxu0 %v201
    %227 = vmatpush.msra.mxu0 %v200
    %228 = vmatpush.msra.mxu0 %v199
    %229 = vmatmul.f32.gmra.mxu0 %v211
    %v230 = vpop.f32.mrf.mxu0
    %v231 = vadd.f32 %v208, %v230
    %232 = vdwg.mxu0
    %v233 = vmul.f32 %v231, 0.70710677
    %vm234 = vcmp.ge.f32.partialorder %v233, 0.0
    %v235 = vsel %vm234, 1.0, -1.0
    %v236 = vand.u32 2147483647, %v233
    %v237 = vmul.f32 %v236, 0.3275911
    %v238 = vadd.f32 %v237, 1.0
    %v239 = vrcp.pop %v238
    %v240 = vmul.f32 %v239, 1.0614054
    %v241 = vadd.f32 %v240, -1.4531521
    %v242 = vmul.f32 %v241, %v239
    %v243 = vadd.f32 %v242, 1.4214138
    %v244 = vmul.f32 %v243, %v239
    %v245 = vadd.f32 %v244, -0.28449672
    %v246 = vmul.f32 %v245, %v239
    %v247 = vadd.f32 %v246, 0.2548296
    %v248 = vmul.f32 %v247, %v239
    %v249 = vsub.f32 0.0, %v236
    %v250 = vmul.f32 %v249, %v236
    %v251 = vmul.f32 %v250, 1.442695
    %v252 = vpow.pop %v251
    %v253 = vmul.f32 %v248, %v252
    %v254 = vsub.f32 1.0, %v253
    %v255 = vmul.f32 %v235, %v254
    %v256 = vmul.f32 %v231, 0.5
    %v257 = vadd.f32 %v255, 1.0
    %v258 = vmul.f32 %v256, %v257
    %v259 = vadd.f32 %v198, %v258
    %v260 = vmul.f32 %v259, 0.7072136
    %v261 = vld [vmem:[%s1] sm:$0xff]
    %v262 = vld [vmem:[%s3] sm:$0xff]
    %v263 = vsub.f32 1.0, %v262
    %265 = vset.pattern.permute.xlu0 0
    %266 = vperm.xlu0 %265, %v263
    %v267 = vpop.permute.xlu0 %266
    %v269 = vmul.f32 %v261, %v267
    %v270 = vld [vmem:[#allocation2 + $0x68] sm:$0xff]
    %v271 = vld [vmem:[#allocation5 + $0x28] sm:$0x1]
    %v272 = vperm.slane %v271, 0
    %vm273 = vcmask 64512
    %v275 = vsel %vm273, %v269, 0
    %277 = vmatpush.msra.mxu0 0.0
    %278 = vmatpush.msra.mxu0 0.0
    %279 = vmatpush.msra.mxu0 0.0
    %280 = vmatpush.msra.mxu0 0.0
    %281 = vmatpush.msra.mxu0 0.0
    %282 = vmatpush.msra.mxu0 0.0
    %283 = vmatpush.msra.mxu0 0.0
    %284 = vmatpush.msra.mxu0 0.0
    %285 = vmatpush.msra.mxu0 0.0
    %286 = vmatpush.msra.mxu0 0.0
    %287 = vmatpush.msra.mxu0 0.0
    %288 = vmatpush.msra.mxu0 0.0
    %289 = vmatpush.msra.mxu0 0.0
    %290 = vmatpush.msra.mxu0 0.0
    %291 = vmatpush.msra.mxu0 0.0
    %292 = vmatpush.msra.mxu0 %v270
    %293 = vmatmul.f32.gmra.mxu0 %v275
    %v294 = vpop.f32.mrf.mxu0
    %v295 = vadd.f32 %v272, %v294
    %296 = vdwg.mxu0
    %v297 = vmul.f32 %v295, 0.70710677
    %vm298 = vcmp.ge.f32.partialorder %v297, 0.0
    %v299 = vsel %vm298, 1.0, -1.0
    %v300 = vand.u32 2147483647, %v297
    %v301 = vmul.f32 %v300, 0.3275911
    %v302 = vadd.f32 %v301, 1.0
    %v303 = vrcp.pop %v302
    %v304 = vmul.f32 %v303, 1.0614054
    %v305 = vadd.f32 %v304, -1.4531521
    %v306 = vmul.f32 %v305, %v303
    %v307 = vadd.f32 %v306, 1.4214138
    %v308 = vmul.f32 %v307, %v303
    %v309 = vadd.f32 %v308, -0.28449672
    %v310 = vmul.f32 %v309, %v303
    %v311 = vadd.f32 %v310, 0.2548296
    %v312 = vmul.f32 %v311, %v303
    %v313 = vsub.f32 0.0, %v300
    %v314 = vmul.f32 %v313, %v300
    %v315 = vmul.f32 %v314, 1.442695
    %v316 = vpow.pop %v315
    %v317 = vmul.f32 %v312, %v316
    %v318 = vsub.f32 1.0, %v317
    %v319 = vmul.f32 %v299, %v318
    %v320 = vmul.f32 %v295, 0.5
    %v321 = vadd.f32 %v319, 1.0
    %v322 = vmul.f32 %v320, %v321
    %v323 = vld [vmem:[#allocation2 + $0x70] sm:$0xff]
    %v324 = vld [vmem:[#allocation2 + $0x78] sm:$0xff]
    %v325 = vld [vmem:[#allocation2 + $0x80] sm:$0xff]
    %v326 = vld [vmem:[#allocation2 + $0x88] sm:$0xff]
    %v327 = vld [vmem:[#allocation2 + $0x90] sm:$0xff]
    %v328 = vld [vmem:[#allocation2 + $0x98] sm:$0xff]
    %v329 = vld [vmem:[#allocation2 + $0xa0] sm:$0xff]
    %v330 = vld [vmem:[#allocation2 + $0xa8] sm:$0xff]
    %v331 = vld [vmem:[#allocation5 + $0x30] sm:$0x1]
    %v332 = vperm.slane %v331, 0
    %v334 = vsel %vm209, %v322, 0
    %336 = vmatpush.msra.mxu0 0.0
    %337 = vmatpush.msra.mxu0 0.0
    %338 = vmatpush.msra.mxu0 0.0
    %339 = vmatpush.msra.mxu0 0.0
    %340 = vmatpush.msra.mxu0 0.0
    %341 = vmatpush.msra.mxu0 0.0
    %342 = vmatpush.msra.mxu0 0.0
    %343 = vmatpush.msra.mxu0 0.0
    %344 = vmatpush.msra.mxu0 %v330
    %345 = vmatpush.msra.mxu0 %v329
    %346 = vmatpush.msra.mxu0 %v328
    %347 = vmatpush.msra.mxu0 %v327
    %348 = vmatpush.msra.mxu0 %v326
    %349 = vmatpush.msra.mxu0 %v325
    %350 = vmatpush.msra.mxu0 %v324
    %351 = vmatpush.msra.mxu0 %v323
    %352 = vmatmul.f32.gmra.mxu0 %v334
    %v353 = vpop.f32.mrf.mxu0
    %v354 = vadd.f32 %v332, %v353
    %355 = vdwg.mxu0
    %v356 = vld [vmem:[%s2] sm:$0xff]
    %v357 = vld [vmem:[#allocation5 + $0x10] sm:$0x1]
    %359 = vset.pattern.permute.xlu0 0
    %360 = vperm.xlu0 %359, %v356
    %v361 = vpop.permute.xlu0 %360
    %v363 = vperm.slane %v357, 0
    %v364 = vmul.f32 %v361, %v363
    %v365 = vld [vmem:[#allocation5 + $0x18] sm:$0x1]
    %v366 = vperm.slane %v365, 0
    %v367 = vadd.f32 %v364, %v366
    %v368 = vmul.f32 %v367, 0.70710677
    %vm369 = vcmp.ge.f32.partialorder %v368, 0.0
    %v370 = vsel %vm369, 1.0, -1.0
    %v371 = vand.u32 2147483647, %v368
    %v372 = vmul.f32 %v371, 0.3275911
    %v373 = vadd.f32 %v372, 1.0
    %v374 = vrcp.pop %v373
    %v375 = vmul.f32 %v374, 1.0614054
    %v376 = vadd.f32 %v375, -1.4531521
    %v377 = vmul.f32 %v376, %v374
    %v378 = vadd.f32 %v377, 1.4214138
    %v379 = vmul.f32 %v378, %v374
    %v380 = vadd.f32 %v379, -0.28449672
    %v381 = vmul.f32 %v380, %v374
    %v382 = vadd.f32 %v381, 0.2548296
    %v383 = vmul.f32 %v382, %v374
    %v384 = vsub.f32 0.0, %v371
    %v385 = vmul.f32 %v384, %v371
    %v386 = vmul.f32 %v385, 1.442695
    %v387 = vpow.pop %v386
    %v388 = vmul.f32 %v383, %v387
    %v389 = vsub.f32 1.0, %v388
    %v390 = vmul.f32 %v370, %v389
    %v391 = vmul.f32 %v367, 0.5
    %v392 = vadd.f32 %v390, 1.0
    %v393 = vmul.f32 %v391, %v392
    %v394 = vld [vmem:[#allocation2 + $0x28] sm:$0xff]
    %v395 = vld [vmem:[#allocation2 + $0x30] sm:$0xff]
    %v396 = vld [vmem:[#allocation2 + $0x38] sm:$0xff]
    %v397 = vld [vmem:[#allocation2 + $0x40] sm:$0xff]
    %v398 = vld [vmem:[#allocation2 + $0x48] sm:$0xff]
    %v399 = vld [vmem:[#allocation2 + $0x50] sm:$0xff]
    %v400 = vld [vmem:[#allocation2 + $0x58] sm:$0xff]
    %v401 = vld [vmem:[#allocation2 + $0x60] sm:$0xff]
    %v402 = vld [vmem:[#allocation5 + $0x20] sm:$0x1]
    %v403 = vperm.slane %v402, 0
    %v405 = vsel %vm209, %v393, 0
    %407 = vmatpush.msra.mxu0 0.0
    %408 = vmatpush.msra.mxu0 0.0
    %409 = vmatpush.msra.mxu0 0.0
    %410 = vmatpush.msra.mxu0 0.0
    %411 = vmatpush.msra.mxu0 0.0
    %412 = vmatpush.msra.mxu0 0.0
    %413 = vmatpush.msra.mxu0 0.0
    %414 = vmatpush.msra.mxu0 0.0
    %415 = vmatpush.msra.mxu0 %v401
    %416 = vmatpush.msra.mxu0 %v400
    %417 = vmatpush.msra.mxu0 %v399
    %418 = vmatpush.msra.mxu0 %v398
    %419 = vmatpush.msra.mxu0 %v397
    %420 = vmatpush.msra.mxu0 %v396
    %421 = vmatpush.msra.mxu0 %v395
    %422 = vmatpush.msra.mxu0 %v394
    %423 = vmatmul.f32.gmra.mxu0 %v405
    %v424 = vpop.f32.mrf.mxu0
    %v425 = vadd.f32 %v403, %v424
    %426 = vdwg.mxu0
    %v427 = vmul.f32 %v354, %v260
    %v428 = vadd.f32 %v427, %v425
    %v429 = vld [vmem:[#allocation2 + $0x110] sm:$0xff]
    %v430 = vld [vmem:[#allocation2 + $0x118] sm:$0xff]
    %v431 = vld [vmem:[#allocation2 + $0x120] sm:$0xff]
    %v432 = vld [vmem:[#allocation2 + $0x128] sm:$0xff]
    %v433 = vld [vmem:[#allocation2 + $0x130] sm:$0xff]
    %v434 = vld [vmem:[#allocation2 + $0x138] sm:$0xff]
    %v435 = vld [vmem:[#allocation2 + $0x140] sm:$0xff]
    %v436 = vld [vmem:[#allocation2 + $0x148] sm:$0xff]
    %v437 = vld [vmem:[#allocation5 + $0x48] sm:$0x1]
    %v438 = vperm.slane %v437, 0
    %v440 = vsel %vm209, %v428, 0
    %442 = vmatpush.msra.mxu0 0.0
    %443 = vmatpush.msra.mxu0 0.0
    %444 = vmatpush.msra.mxu0 0.0
    %445 = vmatpush.msra.mxu0 0.0
    %446 = vmatpush.msra.mxu0 0.0
    %447 = vmatpush.msra.mxu0 0.0
    %448 = vmatpush.msra.mxu0 0.0
    %449 = vmatpush.msra.mxu0 0.0
    %450 = vmatpush.msra.mxu0 %v436
    %451 = vmatpush.msra.mxu0 %v435
    %452 = vmatpush.msra.mxu0 %v434
    %453 = vmatpush.msra.mxu0 %v433
    %454 = vmatpush.msra.mxu0 %v432
    %455 = vmatpush.msra.mxu0 %v431
    %456 = vmatpush.msra.mxu0 %v430
    %457 = vmatpush.msra.mxu0 %v429
    %458 = vmatmul.f32.gmra.mxu0 %v440
    %v459 = vpop.f32.mrf.mxu0
    %v460 = vadd.f32 %v438, %v459
    %461 = vdwg.mxu0
    %v462 = vmul.f32 %v460, 0.70710677
    %vm463 = vcmp.ge.f32.partialorder %v462, 0.0
    %v464 = vsel %vm463, 1.0, -1.0
    %v465 = vand.u32 2147483647, %v462
    %v466 = vmul.f32 %v465, 0.3275911
    %v467 = vadd.f32 %v466, 1.0
    %v468 = vrcp.pop %v467
    %v469 = vmul.f32 %v468, 1.0614054
    %v470 = vadd.f32 %v469, -1.4531521
    %v471 = vmul.f32 %v470, %v468
    %v472 = vadd.f32 %v471, 1.4214138
    %v473 = vmul.f32 %v472, %v468
    %v474 = vadd.f32 %v473, -0.28449672
    %v475 = vmul.f32 %v474, %v468
    %v476 = vadd.f32 %v475, 0.2548296
    %v477 = vmul.f32 %v476, %v468
    %v478 = vsub.f32 0.0, %v465
    %v479 = vmul.f32 %v478, %v465
    %v480 = vmul.f32 %v479, 1.442695
    %v481 = vpow.pop %v480
    %v482 = vmul.f32 %v477, %v481
    %v483 = vsub.f32 1.0, %v482
    %v484 = vmul.f32 %v464, %v483
    %v485 = vmul.f32 %v460, 0.5
    %v486 = vadd.f32 %v484, 1.0
    %v487 = vmul.f32 %v485, %v486
    %v488 = vld [vmem:[#allocation2 + $0x150] sm:$0xff]
    %v489 = vld [vmem:[#allocation2 + $0x158] sm:$0xff]
    %v490 = vld [vmem:[#allocation2 + $0x160] sm:$0xff]
    %v491 = vld [vmem:[#allocation2 + $0x168] sm:$0xff]
    %v492 = vld [vmem:[#allocation5 + $0x50] sm:$0x1]
    %v493 = vperm.slane %v492, 0
    %v495 = vsel %vm120, %v487, 0
    %497 = vmatpush.msra.mxu0 0.0
    %498 = vmatpush.msra.mxu0 0.0
    %499 = vmatpush.msra.mxu0 0.0
    %500 = vmatpush.msra.mxu0 0.0
    %501 = vmatpush.msra.mxu0 0.0
    %502 = vmatpush.msra.mxu0 0.0
    %503 = vmatpush.msra.mxu0 0.0
    %504 = vmatpush.msra.mxu0 0.0
    %505 = vmatpush.msra.mxu0 0.0
    %506 = vmatpush.msra.mxu0 0.0
    %507 = vmatpush.msra.mxu0 0.0
    %508 = vmatpush.msra.mxu0 0.0
    %509 = vmatpush.msra.mxu0 %v491
    %510 = vmatpush.msra.mxu0 %v490
    %511 = vmatpush.msra.mxu0 %v489
    %512 = vmatpush.msra.mxu0 %v488
    %513 = vmatmul.f32.gmra.mxu0 %v495
    %v514 = vpop.f32.mrf.mxu0
    %v515 = vadd.f32 %v493, %v514
    %516 = vdwg.mxu0
    %v517 = vmul.f32 %v515, 0.70710677
    %vm518 = vcmp.ge.f32.partialorder %v517, 0.0
    %v519 = vsel %vm518, 1.0, -1.0
    %v520 = vand.u32 2147483647, %v517
    %v521 = vmul.f32 %v520, 0.3275911
    %v522 = vadd.f32 %v521, 1.0
    %v523 = vrcp.pop %v522
    %v524 = vmul.f32 %v523, 1.0614054
    %v525 = vadd.f32 %v524, -1.4531521
    %v526 = vmul.f32 %v525, %v523
    %v527 = vadd.f32 %v526, 1.4214138
    %v528 = vmul.f32 %v527, %v523
    %v529 = vadd.f32 %v528, -0.28449672
    %v530 = vmul.f32 %v529, %v523
    %v531 = vadd.f32 %v530, 0.2548296
    %v532 = vmul.f32 %v531, %v523
    %v533 = vsub.f32 0.0, %v520
    %v534 = vmul.f32 %v533, %v520
    %v535 = vmul.f32 %v534, 1.442695
    %v536 = vpow.pop %v535
    %v537 = vmul.f32 %v532, %v536
    %v538 = vsub.f32 1.0, %v537
    %v539 = vmul.f32 %v519, %v538
    %v540 = vmul.f32 %v515, 0.5
    %v541 = vadd.f32 %v539, 1.0
    %v542 = vmul.f32 %v540, %v541
    %v543 = vadd.f32 %v487, %v542
    %v544 = vmul.f32 %v543, 0.7072136
    %v545 = vld [vmem:[#allocation2 + $0x170] sm:$0xff]
    %v546 = vld [vmem:[#allocation2 + $0x178] sm:$0xff]
    %v547 = vld [vmem:[#allocation2 + $0x180] sm:$0xff]
    %v548 = vld [vmem:[#allocation2 + $0x188] sm:$0xff]
    %v549 = vld [vmem:[#allocation2 + $0x190] sm:$0xff]
    %v550 = vld [vmem:[#allocation2 + $0x198] sm:$0xff]
    %v551 = vld [vmem:[#allocation2 + $0x1a0] sm:$0xff]
    %v552 = vld [vmem:[#allocation2 + $0x1a8] sm:$0xff]
    %553 = vmatpush.msra.mxu0 0.0
    %554 = vmatpush.msra.mxu0 0.0
    %555 = vmatpush.msra.mxu0 0.0
    %556 = vmatpush.msra.mxu0 0.0
    %557 = vmatpush.msra.mxu0 0.0
    %558 = vmatpush.msra.mxu0 0.0
    %559 = vmatpush.msra.mxu0 0.0
    %560 = vmatpush.msra.mxu0 0.0
    %561 = vmatpush.msra.mxu0 0.0
    %562 = vmatpush.msra.mxu0 0.0
    %563 = vmatpush.msra.mxu0 0.0
    %564 = vmatpush.msra.mxu0 0.0
    %565 = vmatpush.msra.mxu0 %v552
    %566 = vmatpush.msra.mxu0 %v551
    %567 = vmatpush.msra.mxu0 %v550
    %568 = vmatpush.msra.mxu0 %v549
    %569 = vmatmul.f32.gmra.mxu0 %v151
    %v570 = vpop.f32.mrf.mxu0
    %v571 = vadd.f32 0.0, %v570
    %572 = vdwg.mxu0
    %v574 = vsel %vm120, %v544, 0
    %576 = vmatpush.msra.mxu0 0.0
    %577 = vmatpush.msra.mxu0 0.0
    %578 = vmatpush.msra.mxu0 0.0
    %579 = vmatpush.msra.mxu0 0.0
    %580 = vmatpush.msra.mxu0 0.0
    %581 = vmatpush.msra.mxu0 0.0
    %582 = vmatpush.msra.mxu0 0.0
    %583 = vmatpush.msra.mxu0 0.0
    %584 = vmatpush.msra.mxu0 0.0
    %585 = vmatpush.msra.mxu0 0.0
    %586 = vmatpush.msra.mxu0 0.0
    %587 = vmatpush.msra.mxu0 0.0
    %588 = vmatpush.msra.mxu0 %v548
    %589 = vmatpush.msra.mxu0 %v547
    %590 = vmatpush.msra.mxu0 %v546
    %591 = vmatpush.msra.mxu0 %v545
    %592 = vmatmul.f32.gmra.mxu0 %v574
    %v593 = vpop.f32.mrf.mxu0
    %v594 = vadd.f32 %v571, %v593
    %595 = vdwg.mxu0
    %v596 = vld [vmem:[#allocation5 + $0x58] sm:$0x1]
    %v597 = vperm.slane %v596, 0
    %v598 = vadd.f32 %v594, %v597
    %v599 = vmul.f32 %v598, 0.70710677
    %vm600 = vcmp.ge.f32.partialorder %v599, 0.0
    %v601 = vsel %vm600, 1.0, -1.0
    %v602 = vand.u32 2147483647, %v599
    %v603 = vmul.f32 %v602, 0.3275911
    %v604 = vadd.f32 %v603, 1.0
    %v605 = vrcp.pop %v604
    %v606 = vmul.f32 %v605, 1.0614054
    %v607 = vadd.f32 %v606, -1.4531521
    %v608 = vmul.f32 %v607, %v605
    %v609 = vadd.f32 %v608, 1.4214138
    %v610 = vmul.f32 %v609, %v605
    %v611 = vadd.f32 %v610, -0.28449672
    %v612 = vmul.f32 %v611, %v605
    %v613 = vadd.f32 %v612, 0.2548296
    %v614 = vmul.f32 %v613, %v605
    %v615 = vsub.f32 0.0, %v602
    %v616 = vmul.f32 %v615, %v602
    %v617 = vmul.f32 %v616, 1.442695
    %v618 = vpow.pop %v617
    %v619 = vmul.f32 %v614, %v618
    %v620 = vsub.f32 1.0, %v619
    %v621 = vmul.f32 %v601, %v620
    %v622 = vmul.f32 %v598, 0.5
    %v623 = vadd.f32 %v621, 1.0
    %v624 = vmul.f32 %v622, %v623
    %v625 = vld [vmem:[#allocation2 + $0x1b0] sm:$0xf]
    %v626 = vld [vmem:[#allocation5 + $0x60] sm:$0x1]
    %v627 = vperm.slane %v626, 0
    %v629 = vsel %vm60, %v624, 0
    %v632 = vsel %vm64, %v625, 0
    %634 = vmatpush.msra.mxu0 0.0
    %635 = vmatpush.msra.mxu0 0.0
    %636 = vmatpush.msra.mxu0 0.0
    %637 = vmatpush.msra.mxu0 0.0
    %638 = vmatpush.msra.mxu0 0.0
    %639 = vmatpush.msra.mxu0 0.0
    %640 = vmatpush.msra.mxu0 0.0
    %641 = vmatpush.msra.mxu0 0.0
    %642 = vmatpush.msra.mxu0 0.0
    %643 = vmatpush.msra.mxu0 0.0
    %644 = vmatpush.msra.mxu0 0.0
    %645 = vmatpush.msra.mxu0 0.0
    %646 = vmatpush.msra.mxu0 0.0
    %647 = vmatpush.msra.mxu0 0.0
    %648 = vmatpush.msra.mxu0 0.0
    %649 = vmatpush.msra.mxu0 %v632
    %650 = vmatmul.f32.gmra.mxu0 %v629
    %v651 = vpop.f32.mrf.mxu0
    %v652 = vadd.f32 %v627, %v651
    %653 = vdwg.mxu0
    %654 = vst [vmem:[#allocation7] sm:$0xff] %v652
    // Predicated region
    $region34: #{tpu_custom_call.1} parent=1 // pred_check
      _
    $region35: #{tpu_custom_call.1} parent=1 // pred_check_branch
      %656 = sbr.rel (0) target = $region37
    $region36: #{tpu_custom_call.1} parent=1 // pred_region
      %658 = vsyncadd [#allocation4], 0
      %s660 = sshll.u32 [#allocation7], 4
      %s661 = int_to_ptr.vmem [resolvable:$true] %s660
      %s662 = sshll.u32 %s6, 4
      %s663 = int_to_ptr.hbm [resolvable:$true] %s662
      %665 = dma.vmem_to_hbm [thread:$0]  %s661, 128, %s663, [#allocation4]
    $region37: #{tpu_custom_call.1} parent=1 // pred_fallthru
      _
    // Predicated region
    $region38: #{tpu_custom_call.1} parent=1 // pred_check
      _
    $region39: #{tpu_custom_call.1} parent=1 // pred_check_branch
      %667 = sbr.rel (0) target = $region41
    $region40: #{tpu_custom_call.1} parent=1 // pred_region
      %669 = dma.done [#allocation4], 128
    $region41: #{tpu_custom_call.1} parent=1 // pred_fallthru
      _
    %670 = vsyncpa [#allocation3], 1
    %671 = vsyncpa [#allocation6], 1
    %672 = vsyncpa [#allocation4], 1

</llo_original>
